<compile_context>
chip_gen: v7x
topology: tpu7x:2x2x1
jax: 0.10.0
libtpu: 0.0.40
codegen_flags: <defaults>
</compile_context>

<pallas_src>
import functools
import math

import jax
import jax.numpy as jnp
from jax.experimental import pallas as pl
from jax.experimental.pallas import tpu as pltpu


VMEM_LIMIT = 48 * 1024 * 1024  # safe under v7x's 64 MiB, above v5e/v6e defaults


def _tile(dim, target, align):
    """Largest `align`-multiple divisor of `dim` that is <= target (or full dim)."""
    if dim <= target:
        return dim
    t = (target // align) * align
    while t >= align:
        if dim % t == 0:
            return t
        t -= align
    return dim  # fall back to full dim (always legal)


# ---------------------------------------------------------------------------
# Kernel 1: fused LayerNorm -> matmul (+bias) (+gelu_new)
#   grid = (M//tm, N//tn); K (= n_emb) kept whole so LN stats are exact.
#   LN output cached in VMEM scratch, computed only when j == 0.
# ---------------------------------------------------------------------------

def _ln_matmul_kernel(*refs, eps, activation, has_bias, transpose_w):
    if has_bias:
        x_ref, g_ref, be_ref, w_ref, bias_ref, o_ref, xn_ref = refs
    else:
        x_ref, g_ref, be_ref, w_ref, o_ref, xn_ref = refs
        bias_ref = None

    # Compute LayerNorm (fp32 stats over the full feature axis) once per row
    # tile; the j (N) axis is "arbitrary" so j == 0 always runs first on the
    # core owning this row tile.
    @pl.when(pl.program_id(1) == 0)
    def _():
        x = x_ref[...].astype(jnp.float32)                    # (tm, K)
        mean = jnp.mean(x, axis=-1, keepdims=True)
        xc = x - mean
        var = jnp.mean(xc * xc, axis=-1, keepdims=True)
        xn = xc * jax.lax.rsqrt(var + eps)
        xn = xn * g_ref[...].astype(jnp.float32) + be_ref[...].astype(jnp.float32)
        xn_ref[...] = xn.astype(xn_ref.dtype)                 # bf16 cache

    xb = xn_ref[...]                                          # bf16 into the MXU
    w = w_ref[...]
    if transpose_w:                                           # w block is (tn, K)
        y = jax.lax.dot_general(xb, w, (((1,), (1,)), ((), ())),
                                preferred_element_type=jnp.float32)
    else:                                                     # w block is (K, tn)
        y = jnp.dot(xb, w, preferred_element_type=jnp.float32)

    if bias_ref is not None:
        y = y + bias_ref[...].astype(jnp.float32)
    if activation == "gelu_new":
        c = math.sqrt(2.0 / math.pi)
        y = 0.5 * y * (1.0 + jnp.tanh(c * (y + 0.044715 * y * y * y)))
    o_ref[...] = y.astype(o_ref.dtype)


def ln_matmul(x, gamma, beta, w, bias=None, *, activation=None, transpose_w=False,
              out_dtype=jnp.bfloat16, eps=1e-5, tm_target=256, tn_target=512):
    M, K = x.shape
    N = w.shape[0] if transpose_w else w.shape[1]
    tm = _tile(M, tm_target, 8)
    tn = _tile(N, tn_target, 128)
    grid = (M // tm, N // tn)

    in_specs = [
        pl.BlockSpec((tm, K), lambda i, j: (i, 0)),          # x row-tile, full K
        pl.BlockSpec((1, K), lambda i, j: (0, 0)),           # gamma
        pl.BlockSpec((1, K), lambda i, j: (0, 0)),           # beta
    ]
    if transpose_w:
        in_specs.append(pl.BlockSpec((tn, K), lambda i, j: (j, 0)))
    else:
        in_specs.append(pl.BlockSpec((K, tn), lambda i, j: (0, j)))
    args = [x, gamma.reshape(1, K), beta.reshape(1, K), w]
    if bias is not None:
        in_specs.append(pl.BlockSpec((1, tn), lambda i, j: (0, j)))
        args.append(bias.reshape(1, N))

    kernel = functools.partial(_ln_matmul_kernel, eps=eps, activation=activation,
                               has_bias=bias is not None, transpose_w=transpose_w)
    return pl.pallas_call(
        kernel,
        out_shape=jax.ShapeDtypeStruct((M, N), out_dtype),
        grid=grid,
        in_specs=in_specs,
        out_specs=pl.BlockSpec((tm, tn), lambda i, j: (i, j)),
        scratch_shapes=[pltpu.VMEM((tm, K), jnp.bfloat16)],   # cached LN output
        compiler_params=pltpu.CompilerParams(
            # j axis must stay on one core (LN cache); i axis is megacore-split.
            dimension_semantics=("parallel", "arbitrary"),
            vmem_limit_bytes=VMEM_LIMIT),
    )(*args)


# ---------------------------------------------------------------------------
# Kernel 2: tiled matmul + bias + residual (accumulator over K)
# ---------------------------------------------------------------------------

def _matmul_bias_res_kernel(x_ref, w_ref, bias_ref, res_ref, o_ref, acc_ref):
    k = pl.program_id(2)

    @pl.when(k == 0)
    def _():
        acc_ref[...] = jnp.zeros_like(acc_ref)

    acc_ref[...] += jnp.dot(x_ref[...], w_ref[...],
                            preferred_element_type=jnp.float32)

    @pl.when(k == pl.num_programs(2) - 1)
    def _():
        y = (acc_ref[...] + bias_ref[...].astype(jnp.float32)
             + res_ref[...].astype(jnp.float32))
        o_ref[...] = y.astype(o_ref.dtype)


def matmul_bias_res(x, w, bias, residual, *, out_dtype=jnp.bfloat16,
                    tm_target=256, tn_target=512, tk_target=512):
    M, K = x.shape
    N = w.shape[1]
    tm = _tile(M, tm_target, 8)
    tn = _tile(N, tn_target, 128)
    tk = _tile(K, tk_target, 128)
    grid = (M // tm, N // tn, K // tk)
    return pl.pallas_call(
        _matmul_bias_res_kernel,
        out_shape=jax.ShapeDtypeStruct((M, N), out_dtype),
        grid=grid,
        in_specs=[
            pl.BlockSpec((tm, tk), lambda i, j, k: (i, k)),
            pl.BlockSpec((tk, tn), lambda i, j, k: (k, j)),
            pl.BlockSpec((1, tn), lambda i, j, k: (0, j)),
            pl.BlockSpec((tm, tn), lambda i, j, k: (i, j)),
        ],
        out_specs=pl.BlockSpec((tm, tn), lambda i, j, k: (i, j)),
        scratch_shapes=[pltpu.VMEM((tm, tn), jnp.float32)],
        compiler_params=pltpu.CompilerParams(
            dimension_semantics=("parallel", "parallel", "arbitrary"),
            vmem_limit_bytes=VMEM_LIMIT),
    )(x, w, bias.reshape(1, N), residual)


# ---------------------------------------------------------------------------
# Kernel 3: flash-style causal attention on (B*H, S, Dh)
# ---------------------------------------------------------------------------

def _flash_attn_kernel(q_ref, k_ref, v_ref, o_ref, m_sc, l_sc, acc_sc, *, scale):
    qi = pl.program_id(1)
    ki = pl.program_id(2)
    nk = pl.num_programs(2)
    tq = q_ref.shape[1]
    tk = k_ref.shape[1]

    @pl.when(ki == 0)
    def _():
        m_sc[...] = jnp.full_like(m_sc, -jnp.inf)
        l_sc[...] = jnp.zeros_like(l_sc)
        acc_sc[...] = jnp.zeros_like(acc_sc)

    # Skip k-tiles strictly above the causal diagonal (halves FLOPs).
    @pl.when(ki * tk <= qi * tq + (tq - 1))
    def _():
        q = q_ref[0]                                          # (tq, Dh) bf16
        k = k_ref[0]                                          # (tk, Dh)
        v = v_ref[0]
        s = jax.lax.dot_general(q, k, (((1,), (1,)), ((), ())),
                                preferred_element_type=jnp.float32) * scale
        rows = qi * tq + jax.lax.broadcasted_iota(jnp.int32, (tq, tk), 0)
        cols = ki * tk + jax.lax.broadcasted_iota(jnp.int32, (tq, tk), 1)
        s = jnp.where(cols <= rows, s, -jnp.inf)

        m_prev = m_sc[...]                                    # (tq, 1)
        m_new = jnp.maximum(m_prev, jnp.max(s, axis=-1, keepdims=True))
        alpha = jnp.exp(m_prev - m_new)
        p = jnp.exp(s - m_new)
        l_sc[...] = alpha * l_sc[...] + jnp.sum(p, axis=-1, keepdims=True)
        acc_sc[...] = alpha * acc_sc[...] + jnp.dot(
            p.astype(v.dtype), v, preferred_element_type=jnp.float32)
        m_sc[...] = m_new

    @pl.when(ki == nk - 1)
    def _():
        inv = pl.reciprocal(l_sc[...], approx=True)
        o_ref[0] = (acc_sc[...] * inv).astype(o_ref.dtype)


def flash_attention(q, k, v, scale, *, tq_target=256, tk_target=256):
    BH, S, Dh = q.shape
    tq = _tile(S, tq_target, 8)
    tk = _tile(S, tk_target, 8)
    grid = (BH, S // tq, S // tk)
    return pl.pallas_call(
        functools.partial(_flash_attn_kernel, scale=scale),
        out_shape=jax.ShapeDtypeStruct((BH, S, Dh), jnp.bfloat16),
        grid=grid,
        in_specs=[
            pl.BlockSpec((1, tq, Dh), lambda b, i, j: (b, i, 0)),
            pl.BlockSpec((1, tk, Dh), lambda b, i, j: (b, j, 0)),
            pl.BlockSpec((1, tk, Dh), lambda b, i, j: (b, j, 0)),
        ],
        out_specs=pl.BlockSpec((1, tq, Dh), lambda b, i, j: (b, i, 0)),
        scratch_shapes=[
            pltpu.VMEM((tq, 1), jnp.float32),   # running max m
            pltpu.VMEM((tq, 1), jnp.float32),   # running sum l
            pltpu.VMEM((tq, Dh), jnp.float32),  # output accumulator
        ],
        compiler_params=pltpu.CompilerParams(
            dimension_semantics=("parallel", "parallel", "arbitrary"),
            vmem_limit_bytes=VMEM_LIMIT),
    )(q, k, v)


# ---------------------------------------------------------------------------
# Parameters (deterministic synthetic init, GPT-2-style shapes)
# ---------------------------------------------------------------------------

def init_params(key, vocab_size, context_length, n_layer, n_emb):
    keys = jax.random.split(key, 2 + n_layer)
    std = 0.02
    params = {
        # matmul weights / embeddings stored in bf16 (MXU dtype); LN params
        # and biases stay fp32 (added in fp32 inside the kernels).
        "wte": (std * jax.random.normal(keys[0], (vocab_size, n_emb))).astype(jnp.bfloat16),
        "wpe": (std * jax.random.normal(keys[1], (context_length, n_emb))).astype(jnp.bfloat16),
        "ln_f_g": jnp.ones((n_emb,), jnp.float32),
        "ln_f_b": jnp.zeros((n_emb,), jnp.float32),
        "blocks": [],
    }
    for i in range(n_layer):
        k = jax.random.split(keys[2 + i], 4)
        params["blocks"].append({
            "ln1_g": jnp.ones((n_emb,), jnp.float32),
            "ln1_b": jnp.zeros((n_emb,), jnp.float32),
            "c_attn_w": (std * jax.random.normal(k[0], (n_emb, 3 * n_emb))).astype(jnp.bfloat16),
            "c_attn_b": jnp.zeros((3 * n_emb,), jnp.float32),
            "attn_proj_w": (std * jax.random.normal(k[1], (n_emb, n_emb))).astype(jnp.bfloat16),
            "attn_proj_b": jnp.zeros((n_emb,), jnp.float32),
            "ln2_g": jnp.ones((n_emb,), jnp.float32),
            "ln2_b": jnp.zeros((n_emb,), jnp.float32),
            "c_fc_w": (std * jax.random.normal(k[2], (n_emb, 4 * n_emb))).astype(jnp.bfloat16),
            "c_fc_b": jnp.zeros((4 * n_emb,), jnp.float32),
            "mlp_proj_w": (std * jax.random.normal(k[3], (4 * n_emb, n_emb))).astype(jnp.bfloat16),
            "mlp_proj_b": jnp.zeros((n_emb,), jnp.float32),
        })
    return params


# ---------------------------------------------------------------------------
# Forward pass (== GPT2LMHeadModel(input_ids).logits)
# ---------------------------------------------------------------------------

def midi_model_forward(input_ids, params, *, n_head):
    B, S = input_ids.shape
    E = params["wte"].shape[1]
    H = n_head
    Dh = E // H
    scale = 1.0 / math.sqrt(Dh)

    # token + position embeddings (gather is plain-JAX glue)
    h = jnp.take(params["wte"], input_ids, axis=0) + params["wpe"][:S][None, :, :]
    h = h.reshape(B * S, E).astype(jnp.bfloat16)              # residual stream (bf16)

    for blk in params["blocks"]:
        # --- attention sub-block: LN1 fused into QKV matmul -----------------
        qkv = ln_matmul(h, blk["ln1_g"], blk["ln1_b"],
                        blk["c_attn_w"], blk["c_attn_b"])      # (B*S, 3E) bf16
        # TODO(synk): head split/merge still go through XLA reshapes/transposes;
        # reading head-sized (Dh) blocks straight from the QKV slab needs
        # sub-128 lane blocks, which violates the (8,128) BlockSpec rule at
        # GPT-2 head sizes.
        qkv = qkv.reshape(B, S, 3, H, Dh).transpose(2, 0, 3, 1, 4)   # (3, B, H, S, Dh)
        q, k, v = (t.reshape(B * H, S, Dh) for t in qkv)
        a = flash_attention(q, k, v, scale)                     # (B*H, S, Dh) bf16
        a = a.reshape(B, H, S, Dh).transpose(0, 2, 1, 3).reshape(B * S, E)
        # attn output projection with residual add fused into the epilogue
        h = matmul_bias_res(a, blk["attn_proj_w"], blk["attn_proj_b"], h)

        # --- MLP sub-block: LN2 fused into c_fc matmul (+gelu) ---------------
        m = ln_matmul(h, blk["ln2_g"], blk["ln2_b"],
                      blk["c_fc_w"], blk["c_fc_b"], activation="gelu_new")
        h = matmul_bias_res(m, blk["mlp_proj_w"], blk["mlp_proj_b"], h)

    # final LN fused into the (tied, bias-free) lm_head; contract on E via
    # dot_general so wte is never transposed/materialized. fp32 logits.
    logits = ln_matmul(h, params["ln_f_g"], params["ln_f_b"], params["wte"],
                       bias=None, transpose_w=True, out_dtype=jnp.float32)
    vocab = params["wte"].shape[0]
    return logits.reshape(B, S, vocab)


if __name__ == "__main__":
    # Small config consistent with MidiModel.__init__: vocab=len(tokenizer),
    # n_positions=context_length, n_layer, n_head, n_embd=n_emb.
    vocab_size = 64
    context_length = 16
    n_layer = 2
    n_head = 2
    n_emb = 32
    B, S = 2, 8

    key = jax.random.PRNGKey(0)
    pkey, ikey = jax.random.split(key)
    params = init_params(pkey, vocab_size, context_length, n_layer, n_emb)
    input_ids = jax.random.randint(ikey, (B, S), 0, vocab_size, dtype=jnp.int32)

    fwd = jax.jit(functools.partial(midi_model_forward, n_head=n_head))
    logits = fwd(input_ids, params)
    jax.block_until_ready(logits)
    assert logits.shape == (B, S, vocab_size) and logits.dtype == jnp.float32
    assert bool(jnp.all(jnp.isfinite(logits)))
    print("KERNEL_OK")
</pallas_src>

<mosaic_0001>
module attributes {stable_mosaic.version = 11 : i64} {
  func.func @_ln_matmul_kernel(%arg0: i32, %arg1: i32, %arg2: memref<16x32xbf16, #tpu.memory_space<vmem>>, %arg3: memref<1x32xf32, #tpu.memory_space<vmem>>, %arg4: memref<1x32xf32, #tpu.memory_space<vmem>>, %arg5: memref<32x128xbf16, #tpu.memory_space<vmem>>, %arg6: memref<1x128xf32, #tpu.memory_space<vmem>>, %arg7: memref<16x128xbf16, #tpu.memory_space<vmem>>, %arg8: memref<16x32xbf16, #tpu.memory_space<vmem>>) attributes {dimension_semantics = [#tpu.dimension_semantics<parallel>, #tpu.dimension_semantics<arbitrary>], iteration_bounds = array<i64: 1, 1>, scalar_prefetch = 0 : i64, scratch_operands = 1 : i64, tpu.core_type = #tpu.core_type<tc>, window_params = [{transform_indices = @transform_0, window_bounds = array<i64: 16, 32>}, {pipeline_mode = #tpu.pipeline_mode<synchronous>, transform_indices = @transform_1, window_bounds = array<i64: 1, 32>}, {pipeline_mode = #tpu.pipeline_mode<synchronous>, transform_indices = @transform_2, window_bounds = array<i64: 1, 32>}, {transform_indices = @transform_3, window_bounds = array<i64: 32, 128>}, {transform_indices = @transform_4, window_bounds = array<i64: 1, 128>}, {transform_indices = @transform_5, window_bounds = array<i64: 16, 128>}]} {
    %c0_i32 = arith.constant 0 : i32
    %0 = arith.cmpi eq, %arg1, %c0_i32 : i32
    %1 = arith.extui %0 : i1 to i32
    %c0_i32_0 = arith.constant 0 : i32
    %2 = arith.cmpi ne, %1, %c0_i32_0 : i32
    scf.if %2 {
      %c0_12 = arith.constant 0 : index
      %c0_13 = arith.constant 0 : index
      %24 = vector.load %arg2[%c0_12, %c0_13] : memref<16x32xbf16, #tpu.memory_space<vmem>>, vector<16x32xbf16>
      %25 = arith.extf %24 : vector<16x32xbf16> to vector<16x32xf32>
      %cst_14 = arith.constant dense<0.000000e+00> : vector<16xf32>
      %26 = vector.multi_reduction <add>, %25, %cst_14 [1] : vector<16x32xf32> to vector<16xf32>
      %27 = vector.shape_cast %26 : vector<16xf32> to vector<16x1xf32>
      %cst_15 = arith.constant 3.200000e+01 : f32
      %28 = vector.broadcast %cst_15 : f32 to vector<16x1xf32>
      %29 = arith.divf %27, %28 : vector<16x1xf32>
      %30 = vector.broadcast %29 : vector<16x1xf32> to vector<16x32xf32>
      %31 = arith.subf %25, %30 : vector<16x32xf32>
      %32 = arith.mulf %31, %31 : vector<16x32xf32>
      %cst_16 = arith.constant dense<0.000000e+00> : vector<16xf32>
      %33 = vector.multi_reduction <add>, %32, %cst_16 [1] : vector<16x32xf32> to vector<16xf32>
      %34 = vector.shape_cast %33 : vector<16xf32> to vector<16x1xf32>
      %cst_17 = arith.constant 3.200000e+01 : f32
      %35 = vector.broadcast %cst_17 : f32 to vector<16x1xf32>
      %36 = arith.divf %34, %35 : vector<16x1xf32>
      %cst_18 = arith.constant 9.99999974E-6 : f32
      %37 = vector.broadcast %cst_18 : f32 to vector<16x1xf32>
      %38 = arith.addf %36, %37 : vector<16x1xf32>
      %39 = math.rsqrt %38 : vector<16x1xf32>
      %40 = vector.broadcast %39 : vector<16x1xf32> to vector<16x32xf32>
      %41 = arith.mulf %31, %40 : vector<16x32xf32>
      %c0_19 = arith.constant 0 : index
      %c0_20 = arith.constant 0 : index
      %42 = vector.load %arg3[%c0_19, %c0_20] : memref<1x32xf32, #tpu.memory_space<vmem>>, vector<1x32xf32>
      %43 = vector.broadcast %42 : vector<1x32xf32> to vector<16x32xf32>
      %44 = arith.mulf %41, %43 : vector<16x32xf32>
      %c0_21 = arith.constant 0 : index
      %c0_22 = arith.constant 0 : index
      %45 = vector.load %arg4[%c0_21, %c0_22] : memref<1x32xf32, #tpu.memory_space<vmem>>, vector<1x32xf32>
      %46 = vector.broadcast %45 : vector<1x32xf32> to vector<16x32xf32>
      %47 = arith.addf %44, %46 : vector<16x32xf32>
      %48 = arith.truncf %47 : vector<16x32xf32> to vector<16x32xbf16>
      %c0_23 = arith.constant 0 : index
      %c0_24 = arith.constant 0 : index
      %49 = vector.load %arg8[%c0_23, %c0_24] : memref<16x32xbf16, #tpu.memory_space<vmem>>, vector<16x32xbf16>
      tpu.vector_store %arg8[%c0_23, %c0_24], %48 {strides = array<i32>} : memref<16x32xbf16, #tpu.memory_space<vmem>>, vector<16x32xbf16>,
    } else {
    }
    %c0 = arith.constant 0 : index
    %c0_1 = arith.constant 0 : index
    %3 = vector.load %arg8[%c0, %c0_1] : memref<16x32xbf16, #tpu.memory_space<vmem>>, vector<16x32xbf16>
    %c0_2 = arith.constant 0 : index
    %c0_3 = arith.constant 0 : index
    %4 = vector.load %arg5[%c0_2, %c0_3] : memref<32x128xbf16, #tpu.memory_space<vmem>>, vector<32x128xbf16>
    %cst = arith.constant dense<0.000000e+00> : vector<16x128xf32>
    %5 = tpu.matmul %3, %4, %cst {dimension_numbers = #tpu.dot_dimension_numbers<[1], [0], [0], [1], [0, 0, 1, 1], [], []>} : vector<16x32xbf16>, vector<32x128xbf16>, vector<16x128xf32> -> vector<16x128xf32>
    %c0_4 = arith.constant 0 : index
    %c0_5 = arith.constant 0 : index
    %6 = vector.load %arg6[%c0_4, %c0_5] : memref<1x128xf32, #tpu.memory_space<vmem>>, vector<1x128xf32>
    %7 = vector.broadcast %6 : vector<1x128xf32> to vector<16x128xf32>
    %8 = arith.addf %5, %7 : vector<16x128xf32>
    %cst_6 = arith.constant 5.000000e-01 : f32
    %9 = vector.broadcast %cst_6 : f32 to vector<16x128xf32>
    %10 = arith.mulf %9, %8 : vector<16x128xf32>
    %cst_7 = arith.constant 4.471500e-02 : f32
    %11 = vector.broadcast %cst_7 : f32 to vector<16x128xf32>
    %12 = arith.mulf %11, %8 : vector<16x128xf32>
    %13 = arith.mulf %12, %8 : vector<16x128xf32>
    %14 = arith.mulf %13, %8 : vector<16x128xf32>
    %15 = arith.addf %8, %14 : vector<16x128xf32>
    %cst_8 = arith.constant 0.797884583 : f32
    %16 = vector.broadcast %cst_8 : f32 to vector<16x128xf32>
    %17 = arith.mulf %16, %15 : vector<16x128xf32>
    %18 = math.tanh %17 : vector<16x128xf32>
    %cst_9 = arith.constant 1.000000e+00 : f32
    %19 = vector.broadcast %cst_9 : f32 to vector<16x128xf32>
    %20 = arith.addf %19, %18 : vector<16x128xf32>
    %21 = arith.mulf %10, %20 : vector<16x128xf32>
    %22 = arith.truncf %21 : vector<16x128xf32> to vector<16x128xbf16>
    %c0_10 = arith.constant 0 : index
    %c0_11 = arith.constant 0 : index
    %23 = vector.load %arg7[%c0_10, %c0_11] : memref<16x128xbf16, #tpu.memory_space<vmem>>, vector<16x128xbf16>
    tpu.vector_store %arg7[%c0_10, %c0_11], %22 {strides = array<i32>} : memref<16x128xbf16, #tpu.memory_space<vmem>>, vector<16x128xbf16>,
    return
  }
  func.func @transform_0(%arg0: i32, %arg1: i32) -> (i32, i32) {
    %c0_i32 = arith.constant 0 : i32
    %c0_i32_0 = arith.constant 0 : i32
    return %arg0, %c0_i32 : i32, i32
  }
  func.func @transform_1(%arg0: i32, %arg1: i32) -> (i32, i32) {
    %c0_i32 = arith.constant 0 : i32
    %c0_i32_0 = arith.constant 0 : i32
    %c0_i32_1 = arith.constant 0 : i32
    return %c0_i32, %c0_i32_0 : i32, i32
  }
  func.func @transform_2(%arg0: i32, %arg1: i32) -> (i32, i32) {
    %c0_i32 = arith.constant 0 : i32
    %c0_i32_0 = arith.constant 0 : i32
    %c0_i32_1 = arith.constant 0 : i32
    return %c0_i32, %c0_i32_0 : i32, i32
  }
  func.func @transform_3(%arg0: i32, %arg1: i32) -> (i32, i32) {
    %c0_i32 = arith.constant 0 : i32
    %c0_i32_0 = arith.constant 0 : i32
    return %c0_i32, %arg1 : i32, i32
  }
  func.func @transform_4(%arg0: i32, %arg1: i32) -> (i32, i32) {
    %c0_i32 = arith.constant 0 : i32
    %c0_i32_0 = arith.constant 0 : i32
    return %c0_i32, %arg1 : i32, i32
  }
  func.func @transform_5(%arg0: i32, %arg1: i32) -> (i32, i32) {
    %c0_i32 = arith.constant 0 : i32
    return %arg0, %arg1 : i32, i32
  }
}

module attributes {stable_mosaic.version = 11 : i64} {
  func.func @_flash_attn_kernel(%arg0: i32, %arg1: i32, %arg2: i32, %arg3: memref<1x8x16xbf16, #tpu.memory_space<vmem>>, %arg4: memref<1x8x16xbf16, #tpu.memory_space<vmem>>, %arg5: memref<1x8x16xbf16, #tpu.memory_space<vmem>>, %arg6: memref<1x8x16xbf16, #tpu.memory_space<vmem>>, %arg7: memref<8x1xf32, #tpu.memory_space<vmem>>, %arg8: memref<8x1xf32, #tpu.memory_space<vmem>>, %arg9: memref<8x16xf32, #tpu.memory_space<vmem>>) attributes {dimension_semantics = [#tpu.dimension_semantics<parallel>, #tpu.dimension_semantics<parallel>, #tpu.dimension_semantics<arbitrary>], iteration_bounds = array<i64: 4, 1, 1>, scalar_prefetch = 0 : i64, scratch_operands = 3 : i64, tpu.core_type = #tpu.core_type<tc>, window_params = [{transform_indices = @transform_0, window_bounds = array<i64: 1, 8, 16>}, {transform_indices = @transform_1, window_bounds = array<i64: 1, 8, 16>}, {transform_indices = @transform_2, window_bounds = array<i64: 1, 8, 16>}, {transform_indices = @transform_3, window_bounds = array<i64: 1, 8, 16>}]} {
    %c0_i32 = arith.constant 0 : i32
    %0 = arith.cmpi eq, %arg2, %c0_i32 : i32
    %1 = arith.extui %0 : i1 to i32
    %c0_i32_0 = arith.constant 0 : i32
    %2 = arith.cmpi ne, %1, %c0_i32_0 : i32
    scf.if %2 {
      %cst = arith.constant 0xFF800000 : f32
      %12 = vector.broadcast %cst : f32 to vector<8x1xf32>
      %c0 = arith.constant 0 : index
      %c0_5 = arith.constant 0 : index
      %13 = vector.load %arg7[%c0, %c0_5] : memref<8x1xf32, #tpu.memory_space<vmem>>, vector<8x1xf32>
      tpu.vector_store %arg7[%c0, %c0_5], %12 {strides = array<i32>} : memref<8x1xf32, #tpu.memory_space<vmem>>, vector<8x1xf32>,
      %cst_6 = arith.constant 0.000000e+00 : f32
      %14 = vector.broadcast %cst_6 : f32 to vector<8x1xf32>
      %c0_7 = arith.constant 0 : index
      %c0_8 = arith.constant 0 : index
      %15 = vector.load %arg8[%c0_7, %c0_8] : memref<8x1xf32, #tpu.memory_space<vmem>>, vector<8x1xf32>
      tpu.vector_store %arg8[%c0_7, %c0_8], %14 {strides = array<i32>} : memref<8x1xf32, #tpu.memory_space<vmem>>, vector<8x1xf32>,
      %cst_9 = arith.constant 0.000000e+00 : f32
      %16 = vector.broadcast %cst_9 : f32 to vector<8x16xf32>
      %c0_10 = arith.constant 0 : index
      %c0_11 = arith.constant 0 : index
      %17 = vector.load %arg9[%c0_10, %c0_11] : memref<8x16xf32, #tpu.memory_space<vmem>>, vector<8x16xf32>
      tpu.vector_store %arg9[%c0_10, %c0_11], %16 {strides = array<i32>} : memref<8x16xf32, #tpu.memory_space<vmem>>, vector<8x16xf32>,
    } else {
    }
    %c8_i32 = arith.constant 8 : i32
    %3 = arith.muli %arg2, %c8_i32 : i32
    %c8_i32_1 = arith.constant 8 : i32
    %4 = arith.muli %arg1, %c8_i32_1 : i32
    %c7_i32 = arith.constant 7 : i32
    %5 = arith.addi %4, %c7_i32 : i32
    %6 = arith.cmpi sle, %3, %5 : i32
    %7 = arith.extui %6 : i1 to i32
    %c0_i32_2 = arith.constant 0 : i32
    %8 = arith.cmpi ne, %7, %c0_i32_2 : i32
    scf.if %8 {
      %c0 = arith.constant 0 : index
      %c0_5 = arith.constant 0 : index
      %c0_6 = arith.constant 0 : index
      %12 = vector.load %arg3[%c0, %c0_5, %c0_6] : memref<1x8x16xbf16, #tpu.memory_space<vmem>>, vector<1x8x16xbf16>
      %13 = vector.shape_cast %12 : vector<1x8x16xbf16> to vector<8x16xbf16>
      %c0_7 = arith.constant 0 : index
      %c0_8 = arith.constant 0 : index
      %c0_9 = arith.constant 0 : index
      %14 = vector.load %arg4[%c0_7, %c0_8, %c0_9] : memref<1x8x16xbf16, #tpu.memory_space<vmem>>, vector<1x8x16xbf16>
      %15 = vector.shape_cast %14 : vector<1x8x16xbf16> to vector<8x16xbf16>
      %c0_10 = arith.constant 0 : index
      %c0_11 = arith.constant 0 : index
      %c0_12 = arith.constant 0 : index
      %16 = vector.load %arg5[%c0_10, %c0_11, %c0_12] : memref<1x8x16xbf16, #tpu.memory_space<vmem>>, vector<1x8x16xbf16>
      %17 = vector.shape_cast %16 : vector<1x8x16xbf16> to vector<8x16xbf16>
      %cst = arith.constant dense<0.000000e+00> : vector<8x8xf32>
      %18 = tpu.matmul %13, %15, %cst {dimension_numbers = #tpu.dot_dimension_numbers<[1], [1], [0], [0], [0, 0, 1, 0], [], []>} : vector<8x16xbf16>, vector<8x16xbf16>, vector<8x8xf32> -> vector<8x8xf32>
      %cst_13 = arith.constant 2.500000e-01 : f32
      %19 = vector.broadcast %cst_13 : f32 to vector<8x8xf32>
      %20 = arith.mulf %18, %19 : vector<8x8xf32>
      %c8_i32_14 = arith.constant 8 : i32
      %21 = arith.muli %arg1, %c8_i32_14 : i32
      %22 = tpu.iota {dimensions = array<i32: 0>} : vector<8x8xi32>
      %23 = vector.broadcast %21 : i32 to vector<8x8xi32>
      %24 = arith.addi %23, %22 : vector<8x8xi32>
      %c8_i32_15 = arith.constant 8 : i32
      %25 = arith.muli %arg2, %c8_i32_15 : i32
      %26 = tpu.iota {dimensions = array<i32: 1>} : vector<8x8xi32>
      %27 = vector.broadcast %25 : i32 to vector<8x8xi32>
      %28 = arith.addi %27, %26 : vector<8x8xi32>
      %29 = arith.cmpi sle, %28, %24 : vector<8x8xi32>
      %cst_16 = arith.constant 0xFF800000 : f32
      %30 = vector.broadcast %cst_16 : f32 to vector<8x8xf32>
      %31 = arith.select %29, %20, %30 : vector<8x8xi1>, vector<8x8xf32>
      %c0_17 = arith.constant 0 : index
      %c0_18 = arith.constant 0 : index
      %32 = vector.load %arg7[%c0_17, %c0_18] : memref<8x1xf32, #tpu.memory_space<vmem>>, vector<8x1xf32>
      %cst_19 = arith.constant dense<0xFF800000> : vector<8xf32>
      %33 = vector.multi_reduction <maximumf>, %31, %cst_19 [1] : vector<8x8xf32> to vector<8xf32>
      %34 = vector.shape_cast %33 : vector<8xf32> to vector<8x1xf32>
      %35 = arith.maximumf %32, %34 : vector<8x1xf32>
      %36 = arith.subf %32, %35 : vector<8x1xf32>
      %37 = math.exp %36 : vector<8x1xf32>
      %38 = vector.broadcast %35 : vector<8x1xf32> to vector<8x8xf32>
      %39 = arith.subf %31, %38 : vector<8x8xf32>
      %40 = math.exp %39 : vector<8x8xf32>
      %c0_20 = arith.constant 0 : index
      %c0_21 = arith.constant 0 : index
      %41 = vector.load %arg8[%c0_20, %c0_21] : memref<8x1xf32, #tpu.memory_space<vmem>>, vector<8x1xf32>
      %42 = arith.mulf %37, %41 : vector<8x1xf32>
      %cst_22 = arith.constant dense<0.000000e+00> : vector<8xf32>
      %43 = vector.multi_reduction <add>, %40, %cst_22 [1] : vector<8x8xf32> to vector<8xf32>
      %44 = vector.shape_cast %43 : vector<8xf32> to vector<8x1xf32>
      %45 = arith.addf %42, %44 : vector<8x1xf32>
      %c0_23 = arith.constant 0 : index
      %c0_24 = arith.constant 0 : index
      %46 = vector.load %arg8[%c0_23, %c0_24] : memref<8x1xf32, #tpu.memory_space<vmem>>, vector<8x1xf32>
      tpu.vector_store %arg8[%c0_23, %c0_24], %45 {strides = array<i32>} : memref<8x1xf32, #tpu.memory_space<vmem>>, vector<8x1xf32>,
      %c0_25 = arith.constant 0 : index
      %c0_26 = arith.constant 0 : index
      %47 = vector.load %arg9[%c0_25, %c0_26] : memref<8x16xf32, #tpu.memory_space<vmem>>, vector<8x16xf32>
      %48 = vector.broadcast %37 : vector<8x1xf32> to vector<8x16xf32>
      %49 = arith.mulf %48, %47 : vector<8x16xf32>
      %50 = arith.truncf %40 : vector<8x8xf32> to vector<8x8xbf16>
      %cst_27 = arith.constant dense<0.000000e+00> : vector<8x16xf32>
      %51 = tpu.matmul %50, %17, %cst_27 {dimension_numbers = #tpu.dot_dimension_numbers<[1], [0], [0], [1], [0, 0, 1, 1], [], []>} : vector<8x8xbf16>, vector<8x16xbf16>, vector<8x16xf32> -> vector<8x16xf32>
      %52 = arith.addf %49, %51 : vector<8x16xf32>
      %c0_28 = arith.constant 0 : index
      %c0_29 = arith.constant 0 : index
      %53 = vector.load %arg9[%c0_28, %c0_29] : memref<8x16xf32, #tpu.memory_space<vmem>>, vector<8x16xf32>
      tpu.vector_store %arg9[%c0_28, %c0_29], %52 {strides = array<i32>} : memref<8x16xf32, #tpu.memory_space<vmem>>, vector<8x16xf32>,
      %c0_30 = arith.constant 0 : index
      %c0_31 = arith.constant 0 : index
      %54 = vector.load %arg7[%c0_30, %c0_31] : memref<8x1xf32, #tpu.memory_space<vmem>>, vector<8x1xf32>
      tpu.vector_store %arg7[%c0_30, %c0_31], %35 {strides = array<i32>} : memref<8x1xf32, #tpu.memory_space<vmem>>, vector<8x1xf32>,
    } else {
    }
    %c0_i32_3 = arith.constant 0 : i32
    %9 = arith.cmpi eq, %arg2, %c0_i32_3 : i32
    %10 = arith.extui %9 : i1 to i32
    %c0_i32_4 = arith.constant 0 : i32
    %11 = arith.cmpi ne, %10, %c0_i32_4 : i32
    scf.if %11 {
      %c0 = arith.constant 0 : index
      %c0_5 = arith.constant 0 : index
      %12 = vector.load %arg8[%c0, %c0_5] : memref<8x1xf32, #tpu.memory_space<vmem>>, vector<8x1xf32>
      %13 = tpu.reciprocal %12 {approx = true} : vector<8x1xf32> -> vector<8x1xf32>
      %c0_6 = arith.constant 0 : index
      %c0_7 = arith.constant 0 : index
      %14 = vector.load %arg9[%c0_6, %c0_7] : memref<8x16xf32, #tpu.memory_space<vmem>>, vector<8x16xf32>
      %15 = vector.broadcast %13 : vector<8x1xf32> to vector<8x16xf32>
      %16 = arith.mulf %14, %15 : vector<8x16xf32>
      %17 = arith.truncf %16 : vector<8x16xf32> to vector<8x16xbf16>
      %c0_8 = arith.constant 0 : index
      %c0_9 = arith.constant 0 : index
      %c0_10 = arith.constant 0 : index
      %18 = vector.load %arg6[%c0_8, %c0_9, %c0_10] : memref<1x8x16xbf16, #tpu.memory_space<vmem>>, vector<1x8x16xbf16>
      %19 = vector.shape_cast %18 : vector<1x8x16xbf16> to vector<8x16xbf16>
      %20 = vector.shape_cast %17 : vector<8x16xbf16> to vector<1x8x16xbf16>
      tpu.vector_store %arg6[%c0_8, %c0_9, %c0_10], %20 {strides = array<i32>} : memref<1x8x16xbf16, #tpu.memory_space<vmem>>, vector<1x8x16xbf16>,
    } else {
    }
    return
  }
  func.func @transform_0(%arg0: i32, %arg1: i32, %arg2: i32) -> (i32, i32, i32) {
    %c0_i32 = arith.constant 0 : i32
    %c0_i32_0 = arith.constant 0 : i32
    return %arg0, %arg1, %c0_i32 : i32, i32, i32
  }
  func.func @transform_1(%arg0: i32, %arg1: i32, %arg2: i32) -> (i32, i32, i32) {
    %c0_i32 = arith.constant 0 : i32
    %c0_i32_0 = arith.constant 0 : i32
    return %arg0, %arg2, %c0_i32 : i32, i32, i32
  }
  func.func @transform_2(%arg0: i32, %arg1: i32, %arg2: i32) -> (i32, i32, i32) {
    %c0_i32 = arith.constant 0 : i32
    %c0_i32_0 = arith.constant 0 : i32
    return %arg0, %arg2, %c0_i32 : i32, i32, i32
  }
  func.func @transform_3(%arg0: i32, %arg1: i32, %arg2: i32) -> (i32, i32, i32) {
    %c0_i32 = arith.constant 0 : i32
    %c0_i32_0 = arith.constant 0 : i32
    return %arg0, %arg1, %c0_i32 : i32, i32, i32
  }
}

module attributes {stable_mosaic.version = 11 : i64} {
  func.func @_ln_matmul_kernel(%arg0: i32, %arg1: i32, %arg2: memref<16x32xbf16, #tpu.memory_space<vmem>>, %arg3: memref<1x32xf32, #tpu.memory_space<vmem>>, %arg4: memref<1x32xf32, #tpu.memory_space<vmem>>, %arg5: memref<32x96xbf16, #tpu.memory_space<vmem>>, %arg6: memref<1x96xf32, #tpu.memory_space<vmem>>, %arg7: memref<16x96xbf16, #tpu.memory_space<vmem>>, %arg8: memref<16x32xbf16, #tpu.memory_space<vmem>>) attributes {dimension_semantics = [#tpu.dimension_semantics<parallel>, #tpu.dimension_semantics<arbitrary>], iteration_bounds = array<i64: 1, 1>, scalar_prefetch = 0 : i64, scratch_operands = 1 : i64, tpu.core_type = #tpu.core_type<tc>, window_params = [{transform_indices = @transform_0, window_bounds = array<i64: 16, 32>}, {pipeline_mode = #tpu.pipeline_mode<synchronous>, transform_indices = @transform_1, window_bounds = array<i64: 1, 32>}, {pipeline_mode = #tpu.pipeline_mode<synchronous>, transform_indices = @transform_2, window_bounds = array<i64: 1, 32>}, {transform_indices = @transform_3, window_bounds = array<i64: 32, 96>}, {transform_indices = @transform_4, window_bounds = array<i64: 1, 96>}, {transform_indices = @transform_5, window_bounds = array<i64: 16, 96>}]} {
    %c0_i32 = arith.constant 0 : i32
    %0 = arith.cmpi eq, %arg1, %c0_i32 : i32
    %1 = arith.extui %0 : i1 to i32
    %c0_i32_0 = arith.constant 0 : i32
    %2 = arith.cmpi ne, %1, %c0_i32_0 : i32
    scf.if %2 {
      %c0_8 = arith.constant 0 : index
      %c0_9 = arith.constant 0 : index
      %11 = vector.load %arg2[%c0_8, %c0_9] : memref<16x32xbf16, #tpu.memory_space<vmem>>, vector<16x32xbf16>
      %12 = arith.extf %11 : vector<16x32xbf16> to vector<16x32xf32>
      %cst_10 = arith.constant dense<0.000000e+00> : vector<16xf32>
      %13 = vector.multi_reduction <add>, %12, %cst_10 [1] : vector<16x32xf32> to vector<16xf32>
      %14 = vector.shape_cast %13 : vector<16xf32> to vector<16x1xf32>
      %cst_11 = arith.constant 3.200000e+01 : f32
      %15 = vector.broadcast %cst_11 : f32 to vector<16x1xf32>
      %16 = arith.divf %14, %15 : vector<16x1xf32>
      %17 = vector.broadcast %16 : vector<16x1xf32> to vector<16x32xf32>
      %18 = arith.subf %12, %17 : vector<16x32xf32>
      %19 = arith.mulf %18, %18 : vector<16x32xf32>
      %cst_12 = arith.constant dense<0.000000e+00> : vector<16xf32>
      %20 = vector.multi_reduction <add>, %19, %cst_12 [1] : vector<16x32xf32> to vector<16xf32>
      %21 = vector.shape_cast %20 : vector<16xf32> to vector<16x1xf32>
      %cst_13 = arith.constant 3.200000e+01 : f32
      %22 = vector.broadcast %cst_13 : f32 to vector<16x1xf32>
      %23 = arith.divf %21, %22 : vector<16x1xf32>
      %cst_14 = arith.constant 9.99999974E-6 : f32
      %24 = vector.broadcast %cst_14 : f32 to vector<16x1xf32>
      %25 = arith.addf %23, %24 : vector<16x1xf32>
      %26 = math.rsqrt %25 : vector<16x1xf32>
      %27 = vector.broadcast %26 : vector<16x1xf32> to vector<16x32xf32>
      %28 = arith.mulf %18, %27 : vector<16x32xf32>
      %c0_15 = arith.constant 0 : index
      %c0_16 = arith.constant 0 : index
      %29 = vector.load %arg3[%c0_15, %c0_16] : memref<1x32xf32, #tpu.memory_space<vmem>>, vector<1x32xf32>
      %30 = vector.broadcast %29 : vector<1x32xf32> to vector<16x32xf32>
      %31 = arith.mulf %28, %30 : vector<16x32xf32>
      %c0_17 = arith.constant 0 : index
      %c0_18 = arith.constant 0 : index
      %32 = vector.load %arg4[%c0_17, %c0_18] : memref<1x32xf32, #tpu.memory_space<vmem>>, vector<1x32xf32>
      %33 = vector.broadcast %32 : vector<1x32xf32> to vector<16x32xf32>
      %34 = arith.addf %31, %33 : vector<16x32xf32>
      %35 = arith.truncf %34 : vector<16x32xf32> to vector<16x32xbf16>
      %c0_19 = arith.constant 0 : index
      %c0_20 = arith.constant 0 : index
      %36 = vector.load %arg8[%c0_19, %c0_20] : memref<16x32xbf16, #tpu.memory_space<vmem>>, vector<16x32xbf16>
      tpu.vector_store %arg8[%c0_19, %c0_20], %35 {strides = array<i32>} : memref<16x32xbf16, #tpu.memory_space<vmem>>, vector<16x32xbf16>,
    } else {
    }
    %c0 = arith.constant 0 : index
    %c0_1 = arith.constant 0 : index
    %3 = vector.load %arg8[%c0, %c0_1] : memref<16x32xbf16, #tpu.memory_space<vmem>>, vector<16x32xbf16>
    %c0_2 = arith.constant 0 : index
    %c0_3 = arith.constant 0 : index
    %4 = vector.load %arg5[%c0_2, %c0_3] : memref<32x96xbf16, #tpu.memory_space<vmem>>, vector<32x96xbf16>
    %cst = arith.constant dense<0.000000e+00> : vector<16x96xf32>
    %5 = tpu.matmul %3, %4, %cst {dimension_numbers = #tpu.dot_dimension_numbers<[1], [0], [0], [1], [0, 0, 1, 1], [], []>} : vector<16x32xbf16>, vector<32x96xbf16>, vector<16x96xf32> -> vector<16x96xf32>
    %c0_4 = arith.constant 0 : index
    %c0_5 = arith.constant 0 : index
    %6 = vector.load %arg6[%c0_4, %c0_5] : memref<1x96xf32, #tpu.memory_space<vmem>>, vector<1x96xf32>
    %7 = vector.broadcast %6 : vector<1x96xf32> to vector<16x96xf32>
    %8 = arith.addf %5, %7 : vector<16x96xf32>
    %9 = arith.truncf %8 : vector<16x96xf32> to vector<16x96xbf16>
    %c0_6 = arith.constant 0 : index
    %c0_7 = arith.constant 0 : index
    %10 = vector.load %arg7[%c0_6, %c0_7] : memref<16x96xbf16, #tpu.memory_space<vmem>>, vector<16x96xbf16>
    tpu.vector_store %arg7[%c0_6, %c0_7], %9 {strides = array<i32>} : memref<16x96xbf16, #tpu.memory_space<vmem>>, vector<16x96xbf16>,
    return
  }
  func.func @transform_0(%arg0: i32, %arg1: i32) -> (i32, i32) {
    %c0_i32 = arith.constant 0 : i32
    %c0_i32_0 = arith.constant 0 : i32
    return %arg0, %c0_i32 : i32, i32
  }
  func.func @transform_1(%arg0: i32, %arg1: i32) -> (i32, i32) {
    %c0_i32 = arith.constant 0 : i32
    %c0_i32_0 = arith.constant 0 : i32
    %c0_i32_1 = arith.constant 0 : i32
    return %c0_i32, %c0_i32_0 : i32, i32
  }
  func.func @transform_2(%arg0: i32, %arg1: i32) -> (i32, i32) {
    %c0_i32 = arith.constant 0 : i32
    %c0_i32_0 = arith.constant 0 : i32
    %c0_i32_1 = arith.constant 0 : i32
    return %c0_i32, %c0_i32_0 : i32, i32
  }
  func.func @transform_3(%arg0: i32, %arg1: i32) -> (i32, i32) {
    %c0_i32 = arith.constant 0 : i32
    %c0_i32_0 = arith.constant 0 : i32
    return %c0_i32, %arg1 : i32, i32
  }
  func.func @transform_4(%arg0: i32, %arg1: i32) -> (i32, i32) {
    %c0_i32 = arith.constant 0 : i32
    %c0_i32_0 = arith.constant 0 : i32
    return %c0_i32, %arg1 : i32, i32
  }
  func.func @transform_5(%arg0: i32, %arg1: i32) -> (i32, i32) {
    %c0_i32 = arith.constant 0 : i32
    return %arg0, %arg1 : i32, i32
  }
}

module attributes {stable_mosaic.version = 11 : i64} {
  func.func @_matmul_bias_res_kernel(%arg0: i32, %arg1: i32, %arg2: i32, %arg3: memref<16x32xbf16, #tpu.memory_space<vmem>>, %arg4: memref<32x32xbf16, #tpu.memory_space<vmem>>, %arg5: memref<1x32xf32, #tpu.memory_space<vmem>>, %arg6: memref<16x32xbf16, #tpu.memory_space<vmem>>, %arg7: memref<16x32xbf16, #tpu.memory_space<vmem>>, %arg8: memref<16x32xf32, #tpu.memory_space<vmem>>) attributes {dimension_semantics = [#tpu.dimension_semantics<parallel>, #tpu.dimension_semantics<parallel>, #tpu.dimension_semantics<arbitrary>], iteration_bounds = array<i64: 1, 1, 1>, scalar_prefetch = 0 : i64, scratch_operands = 1 : i64, tpu.core_type = #tpu.core_type<tc>, window_params = [{transform_indices = @transform_0, window_bounds = array<i64: 16, 32>}, {transform_indices = @transform_1, window_bounds = array<i64: 32, 32>}, {transform_indices = @transform_2, window_bounds = array<i64: 1, 32>}, {transform_indices = @transform_3, window_bounds = array<i64: 16, 32>}, {transform_indices = @transform_4, window_bounds = array<i64: 16, 32>}]} {
    %c0_i32 = arith.constant 0 : i32
    %0 = arith.cmpi eq, %arg2, %c0_i32 : i32
    %1 = arith.extui %0 : i1 to i32
    %c0_i32_0 = arith.constant 0 : i32
    %2 = arith.cmpi ne, %1, %c0_i32_0 : i32
    scf.if %2 {
      %cst_10 = arith.constant 0.000000e+00 : f32
      %12 = vector.broadcast %cst_10 : f32 to vector<16x32xf32>
      %c0_11 = arith.constant 0 : index
      %c0_12 = arith.constant 0 : index
      %13 = vector.load %arg8[%c0_11, %c0_12] : memref<16x32xf32, #tpu.memory_space<vmem>>, vector<16x32xf32>
      tpu.vector_store %arg8[%c0_11, %c0_12], %12 {strides = array<i32>} : memref<16x32xf32, #tpu.memory_space<vmem>>, vector<16x32xf32>,
    } else {
    }
    %c0 = arith.constant 0 : index
    %c0_1 = arith.constant 0 : index
    %3 = vector.load %arg8[%c0, %c0_1] : memref<16x32xf32, #tpu.memory_space<vmem>>, vector<16x32xf32>
    %c0_2 = arith.constant 0 : index
    %c0_3 = arith.constant 0 : index
    %4 = vector.load %arg3[%c0_2, %c0_3] : memref<16x32xbf16, #tpu.memory_space<vmem>>, vector<16x32xbf16>
    %c0_4 = arith.constant 0 : index
    %c0_5 = arith.constant 0 : index
    %5 = vector.load %arg4[%c0_4, %c0_5] : memref<32x32xbf16, #tpu.memory_space<vmem>>, vector<32x32xbf16>
    %cst = arith.constant dense<0.000000e+00> : vector<16x32xf32>
    %6 = tpu.matmul %4, %5, %cst {dimension_numbers = #tpu.dot_dimension_numbers<[1], [0], [0], [1], [0, 0, 1, 1], [], []>} : vector<16x32xbf16>, vector<32x32xbf16>, vector<16x32xf32> -> vector<16x32xf32>
    %7 = arith.addf %3, %6 : vector<16x32xf32>
    %c0_6 = arith.constant 0 : index
    %c0_7 = arith.constant 0 : index
    %8 = vector.load %arg8[%c0_6, %c0_7] : memref<16x32xf32, #tpu.memory_space<vmem>>, vector<16x32xf32>
    tpu.vector_store %arg8[%c0_6, %c0_7], %7 {strides = array<i32>} : memref<16x32xf32, #tpu.memory_space<vmem>>, vector<16x32xf32>,
    %c0_i32_8 = arith.constant 0 : i32
    %9 = arith.cmpi eq, %arg2, %c0_i32_8 : i32
    %10 = arith.extui %9 : i1 to i32
    %c0_i32_9 = arith.constant 0 : i32
    %11 = arith.cmpi ne, %10, %c0_i32_9 : i32
    scf.if %11 {
      %c0_10 = arith.constant 0 : index
      %c0_11 = arith.constant 0 : index
      %12 = vector.load %arg8[%c0_10, %c0_11] : memref<16x32xf32, #tpu.memory_space<vmem>>, vector<16x32xf32>
      %c0_12 = arith.constant 0 : index
      %c0_13 = arith.constant 0 : index
      %13 = vector.load %arg5[%c0_12, %c0_13] : memref<1x32xf32, #tpu.memory_space<vmem>>, vector<1x32xf32>
      %14 = vector.broadcast %13 : vector<1x32xf32> to vector<16x32xf32>
      %15 = arith.addf %12, %14 : vector<16x32xf32>
      %c0_14 = arith.constant 0 : index
      %c0_15 = arith.constant 0 : index
      %16 = vector.load %arg6[%c0_14, %c0_15] : memref<16x32xbf16, #tpu.memory_space<vmem>>, vector<16x32xbf16>
      %17 = arith.extf %16 : vector<16x32xbf16> to vector<16x32xf32>
      %18 = arith.addf %15, %17 : vector<16x32xf32>
      %19 = arith.truncf %18 : vector<16x32xf32> to vector<16x32xbf16>
      %c0_16 = arith.constant 0 : index
      %c0_17 = arith.constant 0 : index
      %20 = vector.load %arg7[%c0_16, %c0_17] : memref<16x32xbf16, #tpu.memory_space<vmem>>, vector<16x32xbf16>
      tpu.vector_store %arg7[%c0_16, %c0_17], %19 {strides = array<i32>} : memref<16x32xbf16, #tpu.memory_space<vmem>>, vector<16x32xbf16>,
    } else {
    }
    return
  }
  func.func @transform_0(%arg0: i32, %arg1: i32, %arg2: i32) -> (i32, i32) {
    %c0_i32 = arith.constant 0 : i32
    return %arg0, %arg2 : i32, i32
  }
  func.func @transform_1(%arg0: i32, %arg1: i32, %arg2: i32) -> (i32, i32) {
    %c0_i32 = arith.constant 0 : i32
    return %arg2, %arg1 : i32, i32
  }
  func.func @transform_2(%arg0: i32, %arg1: i32, %arg2: i32) -> (i32, i32) {
    %c0_i32 = arith.constant 0 : i32
    %c0_i32_0 = arith.constant 0 : i32
    return %c0_i32, %arg1 : i32, i32
  }
  func.func @transform_3(%arg0: i32, %arg1: i32, %arg2: i32) -> (i32, i32) {
    %c0_i32 = arith.constant 0 : i32
    return %arg0, %arg1 : i32, i32
  }
  func.func @transform_4(%arg0: i32, %arg1: i32, %arg2: i32) -> (i32, i32) {
    %c0_i32 = arith.constant 0 : i32
    return %arg0, %arg1 : i32, i32
  }
}

module attributes {stable_mosaic.version = 11 : i64} {
  func.func @_ln_matmul_kernel(%arg0: i32, %arg1: i32, %arg2: memref<16x32xbf16, #tpu.memory_space<vmem>>, %arg3: memref<1x32xf32, #tpu.memory_space<vmem>>, %arg4: memref<1x32xf32, #tpu.memory_space<vmem>>, %arg5: memref<64x32xbf16, #tpu.memory_space<vmem>>, %arg6: memref<16x64xf32, #tpu.memory_space<vmem>>, %arg7: memref<16x32xbf16, #tpu.memory_space<vmem>>) attributes {dimension_semantics = [#tpu.dimension_semantics<parallel>, #tpu.dimension_semantics<arbitrary>], iteration_bounds = array<i64: 1, 1>, scalar_prefetch = 0 : i64, scratch_operands = 1 : i64, tpu.core_type = #tpu.core_type<tc>, window_params = [{transform_indices = @transform_0, window_bounds = array<i64: 16, 32>}, {pipeline_mode = #tpu.pipeline_mode<synchronous>, transform_indices = @transform_1, window_bounds = array<i64: 1, 32>}, {pipeline_mode = #tpu.pipeline_mode<synchronous>, transform_indices = @transform_2, window_bounds = array<i64: 1, 32>}, {transform_indices = @transform_3, window_bounds = array<i64: 64, 32>}, {transform_indices = @transform_4, window_bounds = array<i64: 16, 64>}]} {
    %c0_i32 = arith.constant 0 : i32
    %0 = arith.cmpi eq, %arg1, %c0_i32 : i32
    %1 = arith.extui %0 : i1 to i32
    %c0_i32_0 = arith.constant 0 : i32
    %2 = arith.cmpi ne, %1, %c0_i32_0 : i32
    scf.if %2 {
      %c0_6 = arith.constant 0 : index
      %c0_7 = arith.constant 0 : index
      %7 = vector.load %arg2[%c0_6, %c0_7] : memref<16x32xbf16, #tpu.memory_space<vmem>>, vector<16x32xbf16>
      %8 = arith.extf %7 : vector<16x32xbf16> to vector<16x32xf32>
      %cst_8 = arith.constant dense<0.000000e+00> : vector<16xf32>
      %9 = vector.multi_reduction <add>, %8, %cst_8 [1] : vector<16x32xf32> to vector<16xf32>
      %10 = vector.shape_cast %9 : vector<16xf32> to vector<16x1xf32>
      %cst_9 = arith.constant 3.200000e+01 : f32
      %11 = vector.broadcast %cst_9 : f32 to vector<16x1xf32>
      %12 = arith.divf %10, %11 : vector<16x1xf32>
      %13 = vector.broadcast %12 : vector<16x1xf32> to vector<16x32xf32>
      %14 = arith.subf %8, %13 : vector<16x32xf32>
      %15 = arith.mulf %14, %14 : vector<16x32xf32>
      %cst_10 = arith.constant dense<0.000000e+00> : vector<16xf32>
      %16 = vector.multi_reduction <add>, %15, %cst_10 [1] : vector<16x32xf32> to vector<16xf32>
      %17 = vector.shape_cast %16 : vector<16xf32> to vector<16x1xf32>
      %cst_11 = arith.constant 3.200000e+01 : f32
      %18 = vector.broadcast %cst_11 : f32 to vector<16x1xf32>
      %19 = arith.divf %17, %18 : vector<16x1xf32>
      %cst_12 = arith.constant 9.99999974E-6 : f32
      %20 = vector.broadcast %cst_12 : f32 to vector<16x1xf32>
      %21 = arith.addf %19, %20 : vector<16x1xf32>
      %22 = math.rsqrt %21 : vector<16x1xf32>
      %23 = vector.broadcast %22 : vector<16x1xf32> to vector<16x32xf32>
      %24 = arith.mulf %14, %23 : vector<16x32xf32>
      %c0_13 = arith.constant 0 : index
      %c0_14 = arith.constant 0 : index
      %25 = vector.load %arg3[%c0_13, %c0_14] : memref<1x32xf32, #tpu.memory_space<vmem>>, vector<1x32xf32>
      %26 = vector.broadcast %25 : vector<1x32xf32> to vector<16x32xf32>
      %27 = arith.mulf %24, %26 : vector<16x32xf32>
      %c0_15 = arith.constant 0 : index
      %c0_16 = arith.constant 0 : index
      %28 = vector.load %arg4[%c0_15, %c0_16] : memref<1x32xf32, #tpu.memory_space<vmem>>, vector<1x32xf32>
      %29 = vector.broadcast %28 : vector<1x32xf32> to vector<16x32xf32>
      %30 = arith.addf %27, %29 : vector<16x32xf32>
      %31 = arith.truncf %30 : vector<16x32xf32> to vector<16x32xbf16>
      %c0_17 = arith.constant 0 : index
      %c0_18 = arith.constant 0 : index
      %32 = vector.load %arg7[%c0_17, %c0_18] : memref<16x32xbf16, #tpu.memory_space<vmem>>, vector<16x32xbf16>
      tpu.vector_store %arg7[%c0_17, %c0_18], %31 {strides = array<i32>} : memref<16x32xbf16, #tpu.memory_space<vmem>>, vector<16x32xbf16>,
    } else {
    }
    %c0 = arith.constant 0 : index
    %c0_1 = arith.constant 0 : index
    %3 = vector.load %arg7[%c0, %c0_1] : memref<16x32xbf16, #tpu.memory_space<vmem>>, vector<16x32xbf16>
    %c0_2 = arith.constant 0 : index
    %c0_3 = arith.constant 0 : index
    %4 = vector.load %arg5[%c0_2, %c0_3] : memref<64x32xbf16, #tpu.memory_space<vmem>>, vector<64x32xbf16>
    %cst = arith.constant dense<0.000000e+00> : vector<16x64xf32>
    %5 = tpu.matmul %3, %4, %cst {dimension_numbers = #tpu.dot_dimension_numbers<[1], [1], [0], [0], [0, 0, 1, 0], [], []>} : vector<16x32xbf16>, vector<64x32xbf16>, vector<16x64xf32> -> vector<16x64xf32>
    %c0_4 = arith.constant 0 : index
    %c0_5 = arith.constant 0 : index
    %6 = vector.load %arg6[%c0_4, %c0_5] : memref<16x64xf32, #tpu.memory_space<vmem>>, vector<16x64xf32>
    tpu.vector_store %arg6[%c0_4, %c0_5], %5 {strides = array<i32>} : memref<16x64xf32, #tpu.memory_space<vmem>>, vector<16x64xf32>,
    return
  }
  func.func @transform_0(%arg0: i32, %arg1: i32) -> (i32, i32) {
    %c0_i32 = arith.constant 0 : i32
    %c0_i32_0 = arith.constant 0 : i32
    return %arg0, %c0_i32 : i32, i32
  }
  func.func @transform_1(%arg0: i32, %arg1: i32) -> (i32, i32) {
    %c0_i32 = arith.constant 0 : i32
    %c0_i32_0 = arith.constant 0 : i32
    %c0_i32_1 = arith.constant 0 : i32
    return %c0_i32, %c0_i32_0 : i32, i32
  }
  func.func @transform_2(%arg0: i32, %arg1: i32) -> (i32, i32) {
    %c0_i32 = arith.constant 0 : i32
    %c0_i32_0 = arith.constant 0 : i32
    %c0_i32_1 = arith.constant 0 : i32
    return %c0_i32, %c0_i32_0 : i32, i32
  }
  func.func @transform_3(%arg0: i32, %arg1: i32) -> (i32, i32) {
    %c0_i32 = arith.constant 0 : i32
    %c0_i32_0 = arith.constant 0 : i32
    return %arg1, %c0_i32 : i32, i32
  }
  func.func @transform_4(%arg0: i32, %arg1: i32) -> (i32, i32) {
    %c0_i32 = arith.constant 0 : i32
    return %arg0, %arg1 : i32, i32
  }
}

module attributes {stable_mosaic.version = 11 : i64} {
  func.func @_matmul_bias_res_kernel(%arg0: i32, %arg1: i32, %arg2: i32, %arg3: memref<16x128xbf16, #tpu.memory_space<vmem>>, %arg4: memref<128x32xbf16, #tpu.memory_space<vmem>>, %arg5: memref<1x32xf32, #tpu.memory_space<vmem>>, %arg6: memref<16x32xbf16, #tpu.memory_space<vmem>>, %arg7: memref<16x32xbf16, #tpu.memory_space<vmem>>, %arg8: memref<16x32xf32, #tpu.memory_space<vmem>>) attributes {dimension_semantics = [#tpu.dimension_semantics<parallel>, #tpu.dimension_semantics<parallel>, #tpu.dimension_semantics<arbitrary>], iteration_bounds = array<i64: 1, 1, 1>, scalar_prefetch = 0 : i64, scratch_operands = 1 : i64, tpu.core_type = #tpu.core_type<tc>, window_params = [{transform_indices = @transform_0, window_bounds = array<i64: 16, 128>}, {transform_indices = @transform_1, window_bounds = array<i64: 128, 32>}, {transform_indices = @transform_2, window_bounds = array<i64: 1, 32>}, {transform_indices = @transform_3, window_bounds = array<i64: 16, 32>}, {transform_indices = @transform_4, window_bounds = array<i64: 16, 32>}]} {
    %c0_i32 = arith.constant 0 : i32
    %0 = arith.cmpi eq, %arg2, %c0_i32 : i32
    %1 = arith.extui %0 : i1 to i32
    %c0_i32_0 = arith.constant 0 : i32
    %2 = arith.cmpi ne, %1, %c0_i32_0 : i32
    scf.if %2 {
      %cst_10 = arith.constant 0.000000e+00 : f32
      %12 = vector.broadcast %cst_10 : f32 to vector<16x32xf32>
      %c0_11 = arith.constant 0 : index
      %c0_12 = arith.constant 0 : index
      %13 = vector.load %arg8[%c0_11, %c0_12] : memref<16x32xf32, #tpu.memory_space<vmem>>, vector<16x32xf32>
      tpu.vector_store %arg8[%c0_11, %c0_12], %12 {strides = array<i32>} : memref<16x32xf32, #tpu.memory_space<vmem>>, vector<16x32xf32>,
    } else {
    }
    %c0 = arith.constant 0 : index
    %c0_1 = arith.constant 0 : index
    %3 = vector.load %arg8[%c0, %c0_1] : memref<16x32xf32, #tpu.memory_space<vmem>>, vector<16x32xf32>
    %c0_2 = arith.constant 0 : index
    %c0_3 = arith.constant 0 : index
    %4 = vector.load %arg3[%c0_2, %c0_3] : memref<16x128xbf16, #tpu.memory_space<vmem>>, vector<16x128xbf16>
    %c0_4 = arith.constant 0 : index
    %c0_5 = arith.constant 0 : index
    %5 = vector.load %arg4[%c0_4, %c0_5] : memref<128x32xbf16, #tpu.memory_space<vmem>>, vector<128x32xbf16>
    %cst = arith.constant dense<0.000000e+00> : vector<16x32xf32>
    %6 = tpu.matmul %4, %5, %cst {dimension_numbers = #tpu.dot_dimension_numbers<[1], [0], [0], [1], [0, 0, 1, 1], [], []>} : vector<16x128xbf16>, vector<128x32xbf16>, vector<16x32xf32> -> vector<16x32xf32>
    %7 = arith.addf %3, %6 : vector<16x32xf32>
    %c0_6 = arith.constant 0 : index
    %c0_7 = arith.constant 0 : index
    %8 = vector.load %arg8[%c0_6, %c0_7] : memref<16x32xf32, #tpu.memory_space<vmem>>, vector<16x32xf32>
    tpu.vector_store %arg8[%c0_6, %c0_7], %7 {strides = array<i32>} : memref<16x32xf32, #tpu.memory_space<vmem>>, vector<16x32xf32>,
    %c0_i32_8 = arith.constant 0 : i32
    %9 = arith.cmpi eq, %arg2, %c0_i32_8 : i32
    %10 = arith.extui %9 : i1 to i32
    %c0_i32_9 = arith.constant 0 : i32
    %11 = arith.cmpi ne, %10, %c0_i32_9 : i32
    scf.if %11 {
      %c0_10 = arith.constant 0 : index
      %c0_11 = arith.constant 0 : index
      %12 = vector.load %arg8[%c0_10, %c0_11] : memref<16x32xf32, #tpu.memory_space<vmem>>, vector<16x32xf32>
      %c0_12 = arith.constant 0 : index
      %c0_13 = arith.constant 0 : index
      %13 = vector.load %arg5[%c0_12, %c0_13] : memref<1x32xf32, #tpu.memory_space<vmem>>, vector<1x32xf32>
      %14 = vector.broadcast %13 : vector<1x32xf32> to vector<16x32xf32>
      %15 = arith.addf %12, %14 : vector<16x32xf32>
      %c0_14 = arith.constant 0 : index
      %c0_15 = arith.constant 0 : index
      %16 = vector.load %arg6[%c0_14, %c0_15] : memref<16x32xbf16, #tpu.memory_space<vmem>>, vector<16x32xbf16>
      %17 = arith.extf %16 : vector<16x32xbf16> to vector<16x32xf32>
      %18 = arith.addf %15, %17 : vector<16x32xf32>
      %19 = arith.truncf %18 : vector<16x32xf32> to vector<16x32xbf16>
      %c0_16 = arith.constant 0 : index
      %c0_17 = arith.constant 0 : index
      %20 = vector.load %arg7[%c0_16, %c0_17] : memref<16x32xbf16, #tpu.memory_space<vmem>>, vector<16x32xbf16>
      tpu.vector_store %arg7[%c0_16, %c0_17], %19 {strides = array<i32>} : memref<16x32xbf16, #tpu.memory_space<vmem>>, vector<16x32xbf16>,
    } else {
    }
    return
  }
  func.func @transform_0(%arg0: i32, %arg1: i32, %arg2: i32) -> (i32, i32) {
    %c0_i32 = arith.constant 0 : i32
    return %arg0, %arg2 : i32, i32
  }
  func.func @transform_1(%arg0: i32, %arg1: i32, %arg2: i32) -> (i32, i32) {
    %c0_i32 = arith.constant 0 : i32
    return %arg2, %arg1 : i32, i32
  }
  func.func @transform_2(%arg0: i32, %arg1: i32, %arg2: i32) -> (i32, i32) {
    %c0_i32 = arith.constant 0 : i32
    %c0_i32_0 = arith.constant 0 : i32
    return %c0_i32, %arg1 : i32, i32
  }
  func.func @transform_3(%arg0: i32, %arg1: i32, %arg2: i32) -> (i32, i32) {
    %c0_i32 = arith.constant 0 : i32
    return %arg0, %arg1 : i32, i32
  }
  func.func @transform_4(%arg0: i32, %arg1: i32, %arg2: i32) -> (i32, i32) {
    %c0_i32 = arith.constant 0 : i32
    return %arg0, %arg1 : i32, i32
  }
}

</mosaic_0001>

<llo_original>
// kernel: midi_model_forward.12
$region0: #{midi_model_forward.12}
  #allocation0 [shape = 'u32[]', space=smem, size = 0x4, offset = 0x4, fixed_abs, tag = 'smem constant byte address 0x4 - core index']
  #allocation1 [shape = 'u32[144,128]{1,0:T(1,128)}', space=vmem, size = 0x12000, scoped, tag = 'internal scratch']
  #allocation2 [shape = 'f32[8,1]{1,0:T(8,128)}', space=vmem, size = 0x1000, scoped, tag = 'scratch operand']
  #allocation3 [shape = 'f32[8,1]{1,0:T(8,128)}', space=vmem, size = 0x1000, scoped, tag = 'scratch operand']
  #allocation4 [shape = 'f32[8,16]{1,0:T(8,128)}', space=vmem, size = 0x1000, scoped, tag = 'scratch operand']
  %s0 = inlined_call_operand.vmem [shape: bf16[4,8,16], index: 0, kind: input, shape index: {}]
  %s1 = inlined_call_operand.vmem [shape: bf16[4,8,16], index: 1, kind: input, shape index: {}]
  %s2 = inlined_call_operand.vmem [shape: bf16[4,8,16], index: 2, kind: input, shape index: {}]
  %s3 = inlined_call_operand.vmem [shape: bf16[4,8,16], index: 3, kind: output, shape index: {}]
  %s4 = sld [smem:[#allocation0]]
  $region57: #{midi_model_forward.12} parent=0
    _
  %s6 = ssub.s32 1, %s4
  %s7 = scalar_select 0, %s6, %s4
  loop: start=0, step=1, limit=6
  $region2: #{midi_model_forward.12} parent=0 // loop_pre_header
    _
  $region3: #{midi_model_forward.12} parent=0 // loop_header
    %s9 = sphi 0, %s13
    %p10 = scmp.ge.s32.totalorder %s9, 6
    %s16 = sphi 0, %s35
    %s17 = sphi 0, %s31
    %s18 = sphi 0, %s27
    %s19 = sphi 0, %s16
    %s20 = sphi 0, %s17
    %s21 = sphi 0, %s18
    %s22 = sphi 0, %s19
    %s23 = sphi 0, %s20
    %s24 = sphi 0, %s21
    %s40 = sphi 0, %s42
    %s43 = sphi 0, %s40
    %s44 = sphi 0, %s43
    %s60 = sphi 0, %s44
    %s68 = sphi 0, %s70
    %s71 = sphi 0, %s68
    %s72 = sphi 0, %s71
    %s88 = sphi 0, %s72
    %s96 = sphi 0, %s98
    %s99 = sphi 0, %s96
    %s100 = sphi 0, %s99
    %s116 = sphi 0, %s100
    %s124 = sphi 0, %s126
    %s127 = sphi 0, %s124
    %s128 = sphi 0, %s127
    %s144 = sphi 0, %s128
  $region4: #{midi_model_forward.12} parent=0 // loop_header_branch
    %12 = sbr.rel (%p10) target = $region8
  $region5: #{midi_model_forward.12} parent=0 // loop_body
    %s14 = ssub.s32 %s9, 1
    %s15 = ssub.s32 %s9, 2
    %s25 = sadd.s32 1, %s18
    %p26 = scmp.ge.s32.totalorder %s25, 1
    %s27 = scalar_select %p26, 0, %s25
    %s28 = sadd.s32 1, %s17
    %s29 = scalar_select %p26, %s28, %s17
    %p30 = scmp.ge.s32.totalorder %s29, 1
    %s31 = scalar_select %p30, 0, %s29
    %s32 = sadd.s32 1, %s16
    %s33 = scalar_select %p30, %s32, %s16
    %p34 = scmp.ge.s32.totalorder %s33, 4
    %s35 = scalar_select %p34, 0, %s33
    %s36 = ssub.s32 %s16, %s35
    %s37 = ssub.s32 %s17, %s31
    %s38 = sor.u32 %s36, %s37
    %p39 = scmp.eq.s32.totalorder %s38, 0
    %s41 = sadd.s32 %s40, 1
    %s42 = scalar_select %p39, %s40, %s41
    %p45 = pneg %p39
    %p46 = scmp.eq.s32.totalorder %s9, 3
    %p47 = por %p45, %p46
    %p48 = scmp.ne.s32.totalorder %s40, %s43
    %p49 = scmp.eq.s32.totalorder %s9, 0
    %p50 = por %p48, %p49
    %p51 = scmp.ne.s32.totalorder %s40, %s43
    %p52 = scmp.eq.s32.totalorder %s14, 3
    %p53 = por %p51, %p52
    %p54 = scmp.ne.s32.totalorder %s43, %s44
    %p55 = scmp.eq.s32.totalorder %s14, 0
    %p56 = por %p54, %p55
    %p57 = scmp.ne.s32.totalorder %s43, %s44
    %p58 = scmp.eq.s32.totalorder %s15, 3
    %p59 = por %p57, %p58
    %p61 = scmp.ne.s32.totalorder %s44, %s60
    %p62 = scmp.eq.s32.totalorder %s15, 0
    %p63 = por %p61, %p62
    %s64 = ssub.s32 %s16, %s35
    %s65 = ssub.s32 %s18, %s27
    %s66 = sor.u32 %s64, %s65
    %p67 = scmp.eq.s32.totalorder %s66, 0
    %s69 = sadd.s32 %s68, 1
    %s70 = scalar_select %p67, %s68, %s69
    %p73 = pneg %p67
    %p74 = scmp.eq.s32.totalorder %s9, 3
    %p75 = por %p73, %p74
    %p76 = scmp.ne.s32.totalorder %s68, %s71
    %p77 = scmp.eq.s32.totalorder %s9, 0
    %p78 = por %p76, %p77
    %p79 = scmp.ne.s32.totalorder %s68, %s71
    %p80 = scmp.eq.s32.totalorder %s14, 3
    %p81 = por %p79, %p80
    %p82 = scmp.ne.s32.totalorder %s71, %s72
    %p83 = scmp.eq.s32.totalorder %s14, 0
    %p84 = por %p82, %p83
    %p85 = scmp.ne.s32.totalorder %s71, %s72
    %p86 = scmp.eq.s32.totalorder %s15, 3
    %p87 = por %p85, %p86
    %p89 = scmp.ne.s32.totalorder %s72, %s88
    %p90 = scmp.eq.s32.totalorder %s15, 0
    %p91 = por %p89, %p90
    %s92 = ssub.s32 %s16, %s35
    %s93 = ssub.s32 %s18, %s27
    %s94 = sor.u32 %s92, %s93
    %p95 = scmp.eq.s32.totalorder %s94, 0
    %s97 = sadd.s32 %s96, 1
    %s98 = scalar_select %p95, %s96, %s97
    %p101 = pneg %p95
    %p102 = scmp.eq.s32.totalorder %s9, 3
    %p103 = por %p101, %p102
    %p104 = scmp.ne.s32.totalorder %s96, %s99
    %p105 = scmp.eq.s32.totalorder %s9, 0
    %p106 = por %p104, %p105
    %p107 = scmp.ne.s32.totalorder %s96, %s99
    %p108 = scmp.eq.s32.totalorder %s14, 3
    %p109 = por %p107, %p108
    %p110 = scmp.ne.s32.totalorder %s99, %s100
    %p111 = scmp.eq.s32.totalorder %s14, 0
    %p112 = por %p110, %p111
    %p113 = scmp.ne.s32.totalorder %s99, %s100
    %p114 = scmp.eq.s32.totalorder %s15, 3
    %p115 = por %p113, %p114
    %p117 = scmp.ne.s32.totalorder %s100, %s116
    %p118 = scmp.eq.s32.totalorder %s15, 0
    %p119 = por %p117, %p118
    %s120 = ssub.s32 %s16, %s35
    %s121 = ssub.s32 %s17, %s31
    %s122 = sor.u32 %s120, %s121
    %p123 = scmp.eq.s32.totalorder %s122, 0
    %s125 = sadd.s32 %s124, 1
    %s126 = scalar_select %p123, %s124, %s125
    %p129 = pneg %p123
    %p130 = scmp.eq.s32.totalorder %s9, 3
    %p131 = por %p129, %p130
    %p132 = scmp.ne.s32.totalorder %s124, %s127
    %p133 = scmp.eq.s32.totalorder %s9, 0
    %p134 = por %p132, %p133
    %p135 = scmp.ne.s32.totalorder %s124, %s127
    %p136 = scmp.eq.s32.totalorder %s14, 3
    %p137 = por %p135, %p136
    %p138 = scmp.ne.s32.totalorder %s127, %s128
    %p139 = scmp.eq.s32.totalorder %s14, 0
    %p140 = por %p138, %p139
    %p141 = scmp.ne.s32.totalorder %s127, %s128
    %p142 = scmp.eq.s32.totalorder %s15, 3
    %p143 = por %p141, %p142
    %p145 = scmp.ne.s32.totalorder %s128, %s144
    %p146 = scmp.eq.s32.totalorder %s15, 0
    %p147 = por %p145, %p146
    %p148 = scmp.le.s32.totalorder 1, %s9
    %p149 = scmp.lt.s32.totalorder %s9, 5
    %p150 = pnand %p148, %p149
    %p151 = pneg %p150
    // Predicated region
    $region9: #{midi_model_forward.12} parent=5 // pred_check
      _
    $region10: #{midi_model_forward.12} parent=5 // pred_check_branch
      %153 = sbr.rel (%p150) target = $region12
    $region11: #{midi_model_forward.12} parent=5 // pred_region
      %s154 = ssub.s32 %s9, 1
    $region12: #{midi_model_forward.12} parent=5 // pred_fallthru
      _
    %p155 = scmp.lt.s32.totalorder %s9, 4
    // Predicated region
    $region13: #{midi_model_forward.12} parent=5 // pred_check
      %p156 = pneg %p155
    $region14: #{midi_model_forward.12} parent=5 // pred_check_branch
      %158 = sbr.rel (%p156) target = $region16
    $region15: #{midi_model_forward.12} parent=5 // pred_region
      // Predicated region
      $region17: #{midi_model_forward.12} parent=15 // pred_check
        %p159 = pneg %p50
      $region18: #{midi_model_forward.12} parent=15 // pred_check_branch
        %161 = sbr.rel (%p159) target = $region20
      $region19: #{midi_model_forward.12} parent=15 // pred_region
        %p162 = scmp.lt.s32.totalorder %s16, 3
        %s163 = scalar_select %p162, %s16, 3
        %p164 = scmp.lt.s32.totalorder %s17, 0
        %s165 = scalar_select %p164, %s17, 0
        %s166 = sadd.s32 %s165, %s163
        %s167 = smul.addr %s166, 4
        %s168 = scalar_lea.vmem %s0, %s167
      $region20: #{midi_model_forward.12} parent=15 // pred_fallthru
        _
      // Predicated region
      $region21: #{midi_model_forward.12} parent=15 // pred_check
        %p169 = pneg %p78
      $region22: #{midi_model_forward.12} parent=15 // pred_check_branch
        %171 = sbr.rel (%p169) target = $region24
      $region23: #{midi_model_forward.12} parent=15 // pred_region
        %p172 = scmp.lt.s32.totalorder %s16, 3
        %s173 = scalar_select %p172, %s16, 3
        %p174 = scmp.lt.s32.totalorder %s18, 0
        %s175 = scalar_select %p174, %s18, 0
        %s176 = sadd.s32 %s175, %s173
        %s177 = smul.addr %s176, 4
        %s178 = scalar_lea.vmem %s1, %s177
      $region24: #{midi_model_forward.12} parent=15 // pred_fallthru
        _
      // Predicated region
      $region25: #{midi_model_forward.12} parent=15 // pred_check
        %p179 = pneg %p106
      $region26: #{midi_model_forward.12} parent=15 // pred_check_branch
        %181 = sbr.rel (%p179) target = $region28
      $region27: #{midi_model_forward.12} parent=15 // pred_region
        %p182 = scmp.lt.s32.totalorder %s16, 3
        %s183 = scalar_select %p182, %s16, 3
        %p184 = scmp.lt.s32.totalorder %s18, 0
        %s185 = scalar_select %p184, %s18, 0
        %s186 = sadd.s32 %s185, %s183
        %s187 = smul.addr %s186, 4
        %s188 = scalar_lea.vmem %s2, %s187
      $region28: #{midi_model_forward.12} parent=15 // pred_fallthru
        _
    $region16: #{midi_model_forward.12} parent=5 // pred_fallthru
      _
    %p189 = scmp.le.s32.totalorder 1, %s9
    %p190 = scmp.lt.s32.totalorder %s9, 5
    %p191 = pnand %p189, %p190
    %p192 = pneg %p191
    // Predicated region
    $region29: #{midi_model_forward.12} parent=5 // pred_check
      _
    $region30: #{midi_model_forward.12} parent=5 // pred_check_branch
      %194 = sbr.rel (%p191) target = $region32
    $region31: #{midi_model_forward.12} parent=5 // pred_region
      %s195 = ssub.s32 %s9, 1
      %p196 = scmp.lt.s32.totalorder %s19, 3
      %s197 = scalar_select %p196, %s19, 3
      %p198 = scmp.lt.s32.totalorder %s20, 0
      %s199 = scalar_select %p198, %s20, 0
      %s200 = sadd.s32 %s199, %s197
      %s201 = smul.addr %s200, 4
      %s202 = scalar_lea.vmem %s0, %s201
      %p203 = pneg %p56
      %p204 = pneg %p53
      %p205 = scmp.lt.s32.totalorder %s19, 3
      %s206 = scalar_select %p205, %s19, 3
      %p207 = scmp.lt.s32.totalorder %s21, 0
      %s208 = scalar_select %p207, %s21, 0
      %s209 = sadd.s32 %s208, %s206
      %s210 = smul.addr %s209, 4
      %s211 = scalar_lea.vmem %s1, %s210
      %p212 = pneg %p84
      %p213 = pneg %p81
      %p214 = scmp.lt.s32.totalorder %s19, 3
      %s215 = scalar_select %p214, %s19, 3
      %p216 = scmp.lt.s32.totalorder %s21, 0
      %s217 = scalar_select %p216, %s21, 0
      %s218 = sadd.s32 %s217, %s215
      %s219 = smul.addr %s218, 4
      %s220 = scalar_lea.vmem %s2, %s219
      %p221 = pneg %p112
      %p222 = pneg %p109
      %p223 = pneg %p140
      %p224 = pneg %p137
      %p225 = scmp.lt.s32.totalorder %s19, 3
      %s226 = scalar_select %p225, %s19, 3
      %p227 = scmp.lt.s32.totalorder %s20, 0
      %s228 = scalar_select %p227, %s20, 0
      %s229 = sadd.s32 %s228, %s226
      %s230 = smul.addr %s229, 4
      %s231 = scalar_lea.vmem %s3, %s230
      %p232 = scmp.lt.s32.totalorder %s19, 3
      %s233 = scalar_select %p232, %s19, 3
      %p234 = scmp.lt.s32.totalorder %s20, 0
      %s235 = scalar_select %p234, %s20, 0
      %s236 = sadd.s32 %s235, %s233
      %s237 = smul.addr %s236, 4
      %s238 = scalar_lea.vmem %s0, %s237
      %p239 = scmp.lt.s32.totalorder %s19, 3
      %s240 = scalar_select %p239, %s19, 3
      %p241 = scmp.lt.s32.totalorder %s21, 0
      %s242 = scalar_select %p241, %s21, 0
      %s243 = sadd.s32 %s242, %s240
      %s244 = smul.addr %s243, 4
      %s245 = scalar_lea.vmem %s1, %s244
      %p246 = scmp.lt.s32.totalorder %s19, 3
      %s247 = scalar_select %p246, %s19, 3
      %p248 = scmp.lt.s32.totalorder %s21, 0
      %s249 = scalar_select %p248, %s21, 0
      %s250 = sadd.s32 %s249, %s247
      %s251 = smul.addr %s250, 4
      %s252 = scalar_lea.vmem %s2, %s251
      %p253 = scmp.lt.s32.totalorder %s19, 3
      %s254 = scalar_select %p253, %s19, 3
      %p255 = scmp.lt.s32.totalorder %s20, 0
      %s256 = scalar_select %p255, %s20, 0
      %s257 = sadd.s32 %s256, %s254
      %s258 = smul.addr %s257, 4
      %s259 = scalar_lea.vmem %s3, %s258
      %p261 = scmp.eq.s32.totalorder %s21, 0
      // Predicated region
      $region33: #{midi_model_forward.12} parent=31 // pred_check
        %p262 = pneg %p261
      $region34: #{midi_model_forward.12} parent=31 // pred_check_branch
        %264 = sbr.rel (%p262) target = $region36
      $region35: #{midi_model_forward.12} parent=31 // pred_region
        %vm265 = vcmask 7168
        %266 = vst.msk [vmem:[#allocation2] sm:$0xff] %vm265, -inf
        %267 = vst.msk [vmem:[#allocation3] sm:$0xff] %vm265, 0.0
        %vm268 = vcmask 130048
        %269 = vst.msk [vmem:[#allocation4] sm:$0xff] %vm268, 0.0
      $region36: #{midi_model_forward.12} parent=31 // pred_fallthru
        _
      %s270 = smul.u32 %s21, 8
      %s271 = smul.u32 %s20, 8
      %s272 = sadd.s32 %s271, 7
      %p273 = scmp.le.s32.totalorder %s270, %s272
      // Predicated region
      $region37: #{midi_model_forward.12} parent=31 // pred_check
        %p274 = pneg %p273
      $region38: #{midi_model_forward.12} parent=31 // pred_check_branch
        %276 = sbr.rel (%p274) target = $region40
      $region39: #{midi_model_forward.12} parent=31 // pred_region
        %v277 = vld [vmem:[%s238] sm:$0xf]
        %v278 = vld [vmem:[%s245] sm:$0xf]
        %v279 = vld [vmem:[%s252] sm:$0xf]
        %vm280 = vcmask 130048
        %v282 = vsel %vm280, %v277, 0
        %v285 = vsel %vm280, %v278, 0
        %287 = vmatprep.subr.bf16.mxu0 0
        %288 = vmatpush1.bf16.xpose.msra.mxu0 %v285
        %289 = vmatprep.subr.bf16.mxu0 0
        %290 = vmatpush1.bf16.xpose.msra.mxu0 0
        %291 = vmatprep.subr.bf16.mxu0 0
        %292 = vmatpush1.bf16.xpose.msra.mxu0 0
        %293 = vmatprep.subr.bf16.mxu0 0
        %294 = vmatpush1.bf16.xpose.msra.mxu0 0
        %295 = vmatprep.subr.bf16.mxu0 0
        %296 = vmatpush1.bf16.xpose.msra.mxu0 0
        %297 = vmatprep.subr.bf16.mxu0 0
        %298 = vmatpush1.bf16.xpose.msra.mxu0 0
        %299 = vmatprep.subr.bf16.mxu0 0
        %300 = vmatpush1.bf16.xpose.msra.mxu0 0
        %301 = vmatprep.subr.bf16.mxu0 0
        %302 = vmatpush1.bf16.xpose.msra.mxu0 0
        %303 = vmatprep.subr.bf16.mxu0 0
        %304 = vmatpush1.bf16.xpose.msra.mxu0 0
        %305 = vmatprep.subr.bf16.mxu0 0
        %306 = vmatpush1.bf16.xpose.msra.mxu0 0
        %307 = vmatprep.subr.bf16.mxu0 0
        %308 = vmatpush1.bf16.xpose.msra.mxu0 0
        %309 = vmatprep.subr.bf16.mxu0 0
        %310 = vmatpush1.bf16.xpose.msra.mxu0 0
        %311 = vmatprep.subr.bf16.mxu0 0
        %312 = vmatpush1.bf16.xpose.msra.mxu0 0
        %313 = vmatprep.subr.bf16.mxu0 0
        %314 = vmatpush1.bf16.xpose.msra.mxu0 0
        %315 = vmatprep.subr.bf16.mxu0 0
        %316 = vmatpush1.bf16.xpose.msra.mxu0 0
        %317 = vmatprep.subr.bf16.mxu0 0
        %318 = vmatpush1.bf16.xpose.msra.mxu0 0
        %319 = vmatprep.mubr.bf16.mxu0 0
        %320 = vmatmul.mubr.bf16.gmra.mrb[0].mxu0 %v282
        %v321 = vpop.f32.mrb[0].mxu0
        %v322 = vadd.f32 0.0, %v321
        %v323 = vpop.f32.mrb[0].mxu0
        %v324 = vpop.f32.mrb[0].mxu0
        %v325 = vpop.f32.mrb[0].mxu0
        %326 = vdwg.mxu0
        %v327 = vmul.f32 %v322, 0.25
        %v328 = vlaneseq
        %v329 = vshrl.u32 %v328, 7
        %v330 = vstv %s271
        %v331 = vadd.s32 %v330, %v329
        %v332 = vlaneseq
        %v333 = vand.u32 %v332, 127
        %v334 = vstv %s270
        %v335 = vadd.s32 %v334, %v333
        %vm336 = vcmp.le.s32.totalorder %v335, %v331
        %v337 = vsel %vm336, %v327, -inf
        %v338 = vld [vmem:[#allocation2] sm:$0xff]
        %vm339 = vcmask 64512
        %v340 = vsel %vm339, %v337, -inf
        %341 = vmax.xlane.f32.xlu0 %v340
        %v342 = vpop.xlane.xlu0 %341
        %v343 = vmax.f32 %v338, %v342
        %v344 = vsub.f32 %v338, %v343
        %v345 = vmul.f32 %v344, 1.442695
        %v346 = vpow.pop %v345
        %348 = vset.pattern.permute.xlu0 0
        %349 = vperm.xlu0 %348, %v343
        %v350 = vpop.permute.xlu0 %349
        %v352 = vsub.f32 %v337, %v350
        %v353 = vmul.f32 %v352, 1.442695
        %v354 = vpow.pop %v353
        %v355 = vld [vmem:[#allocation3] sm:$0xff]
        %v356 = vmul.f32 %v346, %v355
        %v357 = vsel %vm339, %v354, 0.0
        %358 = vadd.xlane.f32.xlu0 %v357
        %v359 = vpop.xlane.xlu0 %358
        %v360 = vadd.f32 %v356, %v359
        %vm361 = vcmask 7168
        %362 = vst.msk [vmem:[#allocation3] sm:$0xff] %vm361, %v360
        %v363 = vld [vmem:[#allocation4] sm:$0xff]
        %365 = vset.pattern.permute.xlu0 0
        %366 = vperm.xlu0 %365, %v346
        %v367 = vpop.permute.xlu0 %366
        %v369 = vmul.f32 %v367, %v363
        %v370 = vpack.c.bf16 %v354, %v354
        %v372 = vsel %vm339, %v370, 0
        %vm374 = vcmask 1043456
        %v376 = vsel %vm374, %v279, 0
        %378 = vmatprep.subr.bf16.mxu0 0
        %379 = vmatpush1.bf16.msra.mxu0 %v376
        %380 = vmatprep.subr.bf16.mxu0 0
        %381 = vmatpush1.bf16.msra.mxu0 0
        %382 = vmatprep.subr.bf16.mxu0 0
        %383 = vmatpush1.bf16.msra.mxu0 0
        %384 = vmatprep.subr.bf16.mxu0 0
        %385 = vmatpush1.bf16.msra.mxu0 0
        %386 = vmatprep.subr.bf16.mxu0 0
        %387 = vmatpush1.bf16.msra.mxu0 0
        %388 = vmatprep.subr.bf16.mxu0 0
        %389 = vmatpush1.bf16.msra.mxu0 0
        %390 = vmatprep.subr.bf16.mxu0 0
        %391 = vmatpush1.bf16.msra.mxu0 0
        %392 = vmatprep.subr.bf16.mxu0 0
        %393 = vmatpush1.bf16.msra.mxu0 0
        %394 = vmatprep.subr.bf16.mxu0 0
        %395 = vmatpush1.bf16.msra.mxu0 0
        %396 = vmatprep.subr.bf16.mxu0 0
        %397 = vmatpush1.bf16.msra.mxu0 0
        %398 = vmatprep.subr.bf16.mxu0 0
        %399 = vmatpush1.bf16.msra.mxu0 0
        %400 = vmatprep.subr.bf16.mxu0 0
        %401 = vmatpush1.bf16.msra.mxu0 0
        %402 = vmatprep.subr.bf16.mxu0 0
        %403 = vmatpush1.bf16.msra.mxu0 0
        %404 = vmatprep.subr.bf16.mxu0 0
        %405 = vmatpush1.bf16.msra.mxu0 0
        %406 = vmatprep.subr.bf16.mxu0 0
        %407 = vmatpush1.bf16.msra.mxu0 0
        %408 = vmatprep.subr.bf16.mxu0 0
        %409 = vmatpush1.bf16.msra.mxu0 0
        %410 = vmatprep.mubr.bf16.mxu0 0
        %411 = vmatmul.mubr.bf16.gmra.mrb[0].mxu0 %v372
        %v412 = vpop.f32.mrb[0].mxu0
        %v413 = vadd.f32 0.0, %v412
        %v414 = vpop.f32.mrb[0].mxu0
        %v415 = vpop.f32.mrb[0].mxu0
        %v416 = vpop.f32.mrb[0].mxu0
        %417 = vdwg.mxu0
        %v418 = vadd.f32 %v369, %v413
        %419 = vst.msk [vmem:[#allocation4] sm:$0xff] %vm280, %v418
        %420 = vst.msk [vmem:[#allocation2] sm:$0xff] %vm361, %v343
      $region40: #{midi_model_forward.12} parent=31 // pred_fallthru
        _
      // Predicated region
      $region41: #{midi_model_forward.12} parent=31 // pred_check
        %p421 = pneg %p261
      $region42: #{midi_model_forward.12} parent=31 // pred_check_branch
        %423 = sbr.rel (%p421) target = $region44
      $region43: #{midi_model_forward.12} parent=31 // pred_region
        %v424 = vld [vmem:[#allocation3] sm:$0xff]
        %v425 = vrcp.pop %v424
        %v426 = vld [vmem:[#allocation4] sm:$0xff]
        %428 = vset.pattern.permute.xlu0 0
        %429 = vperm.xlu0 %428, %v425
        %v430 = vpop.permute.xlu0 %429
        %v432 = vmul.f32 %v426, %v430
        %v433 = vpack.c.bf16 %v432, %v432
        %vm434 = vcmask 125952
        %435 = vst.msk [vmem:[%s259] sm:$0xf] %vm434, %v433
      $region44: #{midi_model_forward.12} parent=31 // pred_fallthru
        _
      %p436 = scmp.lt.s32.totalorder %s19, 3
      %s437 = scalar_select %p436, %s19, 3
      %p438 = scmp.lt.s32.totalorder %s20, 0
      %s439 = scalar_select %p438, %s20, 0
      %s440 = sadd.s32 %s439, %s437
      %s441 = smul.addr %s440, 4
      %s442 = scalar_lea.vmem %s3, %s441
      // Predicated region
      $region45: #{midi_model_forward.12} parent=31 // pred_check
        %p443 = pneg %p137
      $region46: #{midi_model_forward.12} parent=31 // pred_check_branch
        %445 = sbr.rel (%p443) target = $region48
      $region47: #{midi_model_forward.12} parent=31 // pred_region
        _
      $region48: #{midi_model_forward.12} parent=31 // pred_fallthru
        _
    $region32: #{midi_model_forward.12} parent=5 // pred_fallthru
      _
    %p446 = scmp.le.s32.totalorder 2, %s9
    // Predicated region
    $region49: #{midi_model_forward.12} parent=5 // pred_check
      %p447 = pneg %p446
    $region50: #{midi_model_forward.12} parent=5 // pred_check_branch
      %449 = sbr.rel (%p447) target = $region52
    $region51: #{midi_model_forward.12} parent=5 // pred_region
      %s450 = ssub.s32 %s9, 2
      // Predicated region
      $region53: #{midi_model_forward.12} parent=51 // pred_check
        %p451 = pneg %p143
      $region54: #{midi_model_forward.12} parent=51 // pred_check_branch
        %453 = sbr.rel (%p451) target = $region56
      $region55: #{midi_model_forward.12} parent=51 // pred_region
        %p454 = scmp.lt.s32.totalorder %s22, 3
        %s455 = scalar_select %p454, %s22, 3
        %p456 = scmp.lt.s32.totalorder %s23, 0
        %s457 = scalar_select %p456, %s23, 0
        %s458 = sadd.s32 %s457, %s455
        %s459 = smul.addr %s458, 4
        %s460 = scalar_lea.vmem %s3, %s459
      $region56: #{midi_model_forward.12} parent=51 // pred_fallthru
        _
    $region52: #{midi_model_forward.12} parent=5 // pred_fallthru
      _
  $region6: #{midi_model_forward.12} parent=0 // loop_footer
    %s13 = sadd.s32 1, %s9
  $region7: #{midi_model_forward.12} parent=0 // loop_footer_branch
    %8 = sbr.rel target = $region3
  $region8: #{midi_model_forward.12} parent=0 // loop_exit
    _

// kernel: midi_model_forward.14
$region0: #{midi_model_forward.14}
  #allocation0 [shape = 'u32[]', space=smem, size = 0x4, offset = 0x4, fixed_abs, tag = 'smem constant byte address 0x4 - core index']
  #allocation1 [shape = 'u32[144,128]{1,0:T(1,128)}', space=vmem, size = 0x12000, scoped, tag = 'internal scratch']
  #allocation2 [shape = 'bf16[16,32]{1,0:T(16,128)(2,1)}', space=vmem, size = 0x1000, scoped, tag = 'scratch operand']
  %s0 = inlined_call_operand.vmem [shape: bf16[16,32], index: 0, kind: input, shape index: {}]
  %s1 = inlined_call_operand.vmem [shape: f32[1,32], index: 1, kind: input, shape index: {}]
  %s2 = inlined_call_operand.vmem [shape: f32[1,32], index: 2, kind: input, shape index: {}]
  %s3 = inlined_call_operand.vmem [shape: bf16[32,128], index: 3, kind: input, shape index: {}]
  %s4 = inlined_call_operand.vmem [shape: f32[1,128], index: 4, kind: input, shape index: {}]
  %s5 = inlined_call_operand.vmem [shape: bf16[16,128], index: 5, kind: output, shape index: {}]
  %s6 = sld [smem:[#allocation0]]
  $region34: #{midi_model_forward.14} parent=0
    _
  %s8 = ssub.s32 1, %s6
  %s9 = scalar_select 0, %s8, %s6
  // Predicated region
  $region2: #{midi_model_forward.14} parent=0 // pred_check
    _
  $region3: #{midi_model_forward.14} parent=0 // pred_check_branch
    %11 = sbr.rel (0) target = $region5
  $region4: #{midi_model_forward.14} parent=0 // pred_region
    _
  $region5: #{midi_model_forward.14} parent=0 // pred_fallthru
    _
  // Predicated region
  $region6: #{midi_model_forward.14} parent=0 // pred_check
    _
  $region7: #{midi_model_forward.14} parent=0 // pred_check_branch
    %13 = sbr.rel (0) target = $region9
  $region8: #{midi_model_forward.14} parent=0 // pred_region
    _
  $region9: #{midi_model_forward.14} parent=0 // pred_fallthru
    _
  // Predicated region
  $region10: #{midi_model_forward.14} parent=0 // pred_check
    _
  $region11: #{midi_model_forward.14} parent=0 // pred_check_branch
    %15 = sbr.rel (0) target = $region13
  $region12: #{midi_model_forward.14} parent=0 // pred_region
    _
  $region13: #{midi_model_forward.14} parent=0 // pred_fallthru
    _
  // Predicated region
  $region14: #{midi_model_forward.14} parent=0 // pred_check
    _
  $region15: #{midi_model_forward.14} parent=0 // pred_check_branch
    %17 = sbr.rel (0) target = $region17
  $region16: #{midi_model_forward.14} parent=0 // pred_region
    _
  $region17: #{midi_model_forward.14} parent=0 // pred_fallthru
    _
  // Predicated region
  $region18: #{midi_model_forward.14} parent=0 // pred_check
    _
  $region19: #{midi_model_forward.14} parent=0 // pred_check_branch
    %19 = sbr.rel (0) target = $region21
  $region20: #{midi_model_forward.14} parent=0 // pred_region
    _
  $region21: #{midi_model_forward.14} parent=0 // pred_fallthru
    _
  %p21 = scmp.eq.s32.totalorder 0, 0
  // Predicated region
  $region22: #{midi_model_forward.14} parent=0 // pred_check
    %p22 = pneg %p21
  $region23: #{midi_model_forward.14} parent=0 // pred_check_branch
    %24 = sbr.rel (%p22) target = $region25
  $region24: #{midi_model_forward.14} parent=0 // pred_region
    %v25 = vld [vmem:[%s0] sm:$0xf]
    %v26 = vld [vmem:[%s0 + $0x4] sm:$0xf]
    %v27 = vunpack.c.l.bf16 %v25
    %v28 = vunpack.c.l.bf16 %v26
    %vm29 = vcmask 261120
    %v30 = vsel %vm29, %v27, 0.0
    %31 = vadd.xlane.f32.xlu0 %v30
    %v32 = vpop.xlane.xlu0 %31
    %v33 = vsel %vm29, %v28, 0.0
    %34 = vadd.xlane.f32.xlu0 %v33
    %v35 = vpop.xlane.xlu0 %34
    %v36 = vrcp.pop 32.0
    %v37 = vmul.f32 %v32, %v36
    %v38 = vmul.f32 %v35, %v36
    %v39 = vsub.f32 %v27, %v37
    %v40 = vsub.f32 %v28, %v38
    %v41 = vmul.f32 %v39, %v39
    %v42 = vmul.f32 %v40, %v40
    %v43 = vsel %vm29, %v41, 0.0
    %44 = vadd.xlane.f32.xlu0 %v43
    %v45 = vpop.xlane.xlu0 %44
    %v46 = vsel %vm29, %v42, 0.0
    %47 = vadd.xlane.f32.xlu0 %v46
    %v48 = vpop.xlane.xlu0 %47
    %v49 = vmul.f32 %v45, %v36
    %v50 = vmul.f32 %v48, %v36
    %v51 = vadd.f32 %v49, 1e-05
    %v52 = vadd.f32 %v50, 1e-05
    %v53 = vrsqrt.pop %v51
    %v54 = vrsqrt.pop %v52
    %v55 = vmul.f32 %v39, %v53
    %v56 = vmul.f32 %v40, %v54
    %v57 = vld [vmem:[%s1] sm:$0x1]
    %v59 = vlaneseq
    %v60 = vshrl.u32 %v59, 7
    %v61 = vsub.s32 0, %v60
    %v62 = vrot.slane %v57, %v61
    %v64 = vmul.f32 %v55, %v62
    %v65 = vmul.f32 %v56, %v62
    %v66 = vld [vmem:[%s2] sm:$0x1]
    %v68 = vlaneseq
    %v69 = vshrl.u32 %v68, 7
    %v70 = vsub.s32 0, %v69
    %v71 = vrot.slane %v66, %v70
    %v73 = vadd.f32 %v64, %v71
    %v74 = vadd.f32 %v65, %v71
    %v75 = vpack.c.bf16 %v74, %v73
    %76 = vst.msk [vmem:[#allocation2] sm:$0xff] %vm29, %v75
  $region25: #{midi_model_forward.14} parent=0 // pred_fallthru
    _
  %v77 = vld [vmem:[#allocation2] sm:$0xff]
  %v78 = vld [vmem:[%s3] sm:$0xf]
  %v79 = vld [vmem:[%s3 + $0x4] sm:$0xf]
  %v80 = vld [vmem:[%s3 + $0x8] sm:$0xf]
  %v81 = vld [vmem:[%s3 + $0xc] sm:$0xf]
  %v82 = vld [vmem:[%s4] sm:$0x1]
  %v84 = vlaneseq
  %v85 = vshrl.u32 %v84, 7
  %v86 = vsub.s32 0, %v85
  %v87 = vrot.slane %v82, %v86
  %v93 = vunpack.c.l.b16 %v78
  %v94 = vunpack.c.l.b16 %v79
  %v95 = vunpack.c.l.b16 %v80
  %v96 = vunpack.c.l.b16 %v81
  %v97 = vpack.c.b16 %v94, %v93
  %v98 = vpack.c.b16 %v96, %v95
  %vm101 = vcmask 261120
  %v103 = vsel %vm101, %v77, 0
  %105 = vmatprep.subr.bf16.mxu0 0
  %106 = vmatpush1.bf16.msra.mxu0 %v97
  %107 = vmatprep.subr.bf16.mxu0 0
  %108 = vmatpush1.bf16.msra.mxu0 %v98
  %109 = vmatprep.subr.bf16.mxu0 0
  %110 = vmatpush1.bf16.msra.mxu0 0
  %111 = vmatprep.subr.bf16.mxu0 0
  %112 = vmatpush1.bf16.msra.mxu0 0
  %113 = vmatprep.subr.bf16.mxu0 0
  %114 = vmatpush1.bf16.msra.mxu0 0
  %115 = vmatprep.subr.bf16.mxu0 0
  %116 = vmatpush1.bf16.msra.mxu0 0
  %117 = vmatprep.subr.bf16.mxu0 0
  %118 = vmatpush1.bf16.msra.mxu0 0
  %119 = vmatprep.subr.bf16.mxu0 0
  %120 = vmatpush1.bf16.msra.mxu0 0
  %121 = vmatprep.subr.bf16.mxu0 0
  %122 = vmatpush1.bf16.msra.mxu0 0
  %123 = vmatprep.subr.bf16.mxu0 0
  %124 = vmatpush1.bf16.msra.mxu0 0
  %125 = vmatprep.subr.bf16.mxu0 0
  %126 = vmatpush1.bf16.msra.mxu0 0
  %127 = vmatprep.subr.bf16.mxu0 0
  %128 = vmatpush1.bf16.msra.mxu0 0
  %129 = vmatprep.subr.bf16.mxu0 0
  %130 = vmatpush1.bf16.msra.mxu0 0
  %131 = vmatprep.subr.bf16.mxu0 0
  %132 = vmatpush1.bf16.msra.mxu0 0
  %133 = vmatprep.subr.bf16.mxu0 0
  %134 = vmatpush1.bf16.msra.mxu0 0
  %135 = vmatprep.subr.bf16.mxu0 0
  %136 = vmatpush1.bf16.msra.mxu0 0
  %137 = vmatprep.mubr.bf16.mxu0 0
  %138 = vmatmul.mubr.bf16.gmra.mrb[0].mxu0 %v103
  %v139 = vpop.f32.mrb[0].mxu0
  %v140 = vadd.f32 %v87, %v139
  %v141 = vpop.f32.mrb[0].mxu0
  %v142 = vpop.f32.mrb[0].mxu0
  %v143 = vadd.f32 %v87, %v142
  %v144 = vpop.f32.mrb[0].mxu0
  %145 = vdwg.mxu0
  %v146 = vmul.f32 %v140, 0.5
  %v147 = vmul.f32 %v143, 0.5
  %v148 = vmul.f32 %v140, 0.044715
  %v149 = vmul.f32 %v143, 0.044715
  %v150 = vmul.f32 %v148, %v140
  %v151 = vmul.f32 %v149, %v143
  %v152 = vmul.f32 %v150, %v140
  %v153 = vmul.f32 %v151, %v143
  %v154 = vadd.f32 %v140, %v152
  %v155 = vadd.f32 %v143, %v153
  %v156 = vmul.f32 %v154, 0.7978846
  %v157 = vmul.f32 %v155, 0.7978846
  %v158 = vtanh.pop %v156
  %v159 = vtanh.pop %v157
  %v160 = vadd.f32 %v158, 1.0
  %v161 = vadd.f32 %v159, 1.0
  %v162 = vmul.f32 %v146, %v160
  %v163 = vmul.f32 %v147, %v161
  %v164 = vpack.c.bf16 %v163, %v162
  %v166 = vunpack.c.l.b16 %v164
  %v167 = vunpack.c.h.b16 %v164
  %v168 = vpack.c.b16 %v166, %v166
  %v169 = vpack.c.b16 %v167, %v167
  %172 = vst [vmem:[%s5] sm:$0xf] %v168
  %173 = vst [vmem:[%s5 + $0x4] sm:$0xf] %v169
  // Predicated region
  $region26: #{midi_model_forward.14} parent=0 // pred_check
    _
  $region27: #{midi_model_forward.14} parent=0 // pred_check_branch
    %175 = sbr.rel (0) target = $region29
  $region28: #{midi_model_forward.14} parent=0 // pred_region
    _
  $region29: #{midi_model_forward.14} parent=0 // pred_fallthru
    _
  // Predicated region
  $region30: #{midi_model_forward.14} parent=0 // pred_check
    _
  $region31: #{midi_model_forward.14} parent=0 // pred_check_branch
    %177 = sbr.rel (0) target = $region33
  $region32: #{midi_model_forward.14} parent=0 // pred_region
    _
  $region33: #{midi_model_forward.14} parent=0 // pred_fallthru
    _

// kernel: midi_model_forward.11
$region0: #{midi_model_forward.11}
  #allocation0 [shape = 'u32[]', space=smem, size = 0x4, offset = 0x4, fixed_abs, tag = 'smem constant byte address 0x4 - core index']
  #allocation1 [shape = 'u32[144,128]{1,0:T(1,128)}', space=vmem, size = 0x12000, scoped, tag = 'internal scratch']
  #allocation2 [shape = 'bf16[16,32]{1,0:T(16,128)(2,1)}', space=vmem, size = 0x1000, scoped, tag = 'scratch operand']
  %s0 = inlined_call_operand.vmem [shape: bf16[16,32], index: 0, kind: input, shape index: {}]
  %s1 = inlined_call_operand.vmem [shape: f32[1,32], index: 1, kind: input, shape index: {}]
  %s2 = inlined_call_operand.vmem [shape: f32[1,32], index: 2, kind: input, shape index: {}]
  %s3 = inlined_call_operand.vmem [shape: bf16[32,96], index: 3, kind: input, shape index: {}]
  %s4 = inlined_call_operand.vmem [shape: f32[1,96], index: 4, kind: input, shape index: {}]
  %s5 = inlined_call_operand.vmem [shape: bf16[16,96], index: 5, kind: output, shape index: {}]
  %s6 = sld [smem:[#allocation0]]
  $region34: #{midi_model_forward.11} parent=0
    _
  %s8 = ssub.s32 1, %s6
  %s9 = scalar_select 0, %s8, %s6
  // Predicated region
  $region2: #{midi_model_forward.11} parent=0 // pred_check
    _
  $region3: #{midi_model_forward.11} parent=0 // pred_check_branch
    %11 = sbr.rel (0) target = $region5
  $region4: #{midi_model_forward.11} parent=0 // pred_region
    _
  $region5: #{midi_model_forward.11} parent=0 // pred_fallthru
    _
  // Predicated region
  $region6: #{midi_model_forward.11} parent=0 // pred_check
    _
  $region7: #{midi_model_forward.11} parent=0 // pred_check_branch
    %13 = sbr.rel (0) target = $region9
  $region8: #{midi_model_forward.11} parent=0 // pred_region
    _
  $region9: #{midi_model_forward.11} parent=0 // pred_fallthru
    _
  // Predicated region
  $region10: #{midi_model_forward.11} parent=0 // pred_check
    _
  $region11: #{midi_model_forward.11} parent=0 // pred_check_branch
    %15 = sbr.rel (0) target = $region13
  $region12: #{midi_model_forward.11} parent=0 // pred_region
    _
  $region13: #{midi_model_forward.11} parent=0 // pred_fallthru
    _
  // Predicated region
  $region14: #{midi_model_forward.11} parent=0 // pred_check
    _
  $region15: #{midi_model_forward.11} parent=0 // pred_check_branch
    %17 = sbr.rel (0) target = $region17
  $region16: #{midi_model_forward.11} parent=0 // pred_region
    _
  $region17: #{midi_model_forward.11} parent=0 // pred_fallthru
    _
  // Predicated region
  $region18: #{midi_model_forward.11} parent=0 // pred_check
    _
  $region19: #{midi_model_forward.11} parent=0 // pred_check_branch
    %19 = sbr.rel (0) target = $region21
  $region20: #{midi_model_forward.11} parent=0 // pred_region
    _
  $region21: #{midi_model_forward.11} parent=0 // pred_fallthru
    _
  %p21 = scmp.eq.s32.totalorder 0, 0
  // Predicated region
  $region22: #{midi_model_forward.11} parent=0 // pred_check
    %p22 = pneg %p21
  $region23: #{midi_model_forward.11} parent=0 // pred_check_branch
    %24 = sbr.rel (%p22) target = $region25
  $region24: #{midi_model_forward.11} parent=0 // pred_region
    %v25 = vld [vmem:[%s0] sm:$0xf]
    %v26 = vld [vmem:[%s0 + $0x4] sm:$0xf]
    %v27 = vunpack.c.l.bf16 %v25
    %v28 = vunpack.c.l.bf16 %v26
    %vm29 = vcmask 261120
    %v30 = vsel %vm29, %v27, 0.0
    %31 = vadd.xlane.f32.xlu0 %v30
    %v32 = vpop.xlane.xlu0 %31
    %v33 = vsel %vm29, %v28, 0.0
    %34 = vadd.xlane.f32.xlu0 %v33
    %v35 = vpop.xlane.xlu0 %34
    %v36 = vrcp.pop 32.0
    %v37 = vmul.f32 %v32, %v36
    %v38 = vmul.f32 %v35, %v36
    %v39 = vsub.f32 %v27, %v37
    %v40 = vsub.f32 %v28, %v38
    %v41 = vmul.f32 %v39, %v39
    %v42 = vmul.f32 %v40, %v40
    %v43 = vsel %vm29, %v41, 0.0
    %44 = vadd.xlane.f32.xlu0 %v43
    %v45 = vpop.xlane.xlu0 %44
    %v46 = vsel %vm29, %v42, 0.0
    %47 = vadd.xlane.f32.xlu0 %v46
    %v48 = vpop.xlane.xlu0 %47
    %v49 = vmul.f32 %v45, %v36
    %v50 = vmul.f32 %v48, %v36
    %v51 = vadd.f32 %v49, 1e-05
    %v52 = vadd.f32 %v50, 1e-05
    %v53 = vrsqrt.pop %v51
    %v54 = vrsqrt.pop %v52
    %v55 = vmul.f32 %v39, %v53
    %v56 = vmul.f32 %v40, %v54
    %v57 = vld [vmem:[%s1] sm:$0x1]
    %v59 = vlaneseq
    %v60 = vshrl.u32 %v59, 7
    %v61 = vsub.s32 0, %v60
    %v62 = vrot.slane %v57, %v61
    %v64 = vmul.f32 %v55, %v62
    %v65 = vmul.f32 %v56, %v62
    %v66 = vld [vmem:[%s2] sm:$0x1]
    %v68 = vlaneseq
    %v69 = vshrl.u32 %v68, 7
    %v70 = vsub.s32 0, %v69
    %v71 = vrot.slane %v66, %v70
    %v73 = vadd.f32 %v64, %v71
    %v74 = vadd.f32 %v65, %v71
    %v75 = vpack.c.bf16 %v74, %v73
    %76 = vst.msk [vmem:[#allocation2] sm:$0xff] %vm29, %v75
  $region25: #{midi_model_forward.11} parent=0 // pred_fallthru
    _
  %v77 = vld [vmem:[#allocation2] sm:$0xff]
  %v78 = vld [vmem:[%s3] sm:$0xf]
  %v79 = vld [vmem:[%s3 + $0x4] sm:$0xf]
  %v80 = vld [vmem:[%s3 + $0x8] sm:$0xf]
  %v81 = vld [vmem:[%s3 + $0xc] sm:$0xf]
  %v82 = vld [vmem:[%s4] sm:$0x1]
  %v84 = vlaneseq
  %v85 = vshrl.u32 %v84, 7
  %v86 = vsub.s32 0, %v85
  %v87 = vrot.slane %v82, %v86
  %v93 = vunpack.c.l.b16 %v78
  %v94 = vunpack.c.l.b16 %v79
  %v95 = vunpack.c.l.b16 %v80
  %v96 = vunpack.c.l.b16 %v81
  %v97 = vpack.c.b16 %v94, %v93
  %v98 = vpack.c.b16 %v96, %v95
  %vm101 = vcmask 261120
  %v103 = vsel %vm101, %v77, 0
  %105 = vmatprep.subr.bf16.mxu0 0
  %106 = vmatpush1.bf16.msra.mxu0 %v97
  %107 = vmatprep.subr.bf16.mxu0 0
  %108 = vmatpush1.bf16.msra.mxu0 %v98
  %109 = vmatprep.subr.bf16.mxu0 0
  %110 = vmatpush1.bf16.msra.mxu0 0
  %111 = vmatprep.subr.bf16.mxu0 0
  %112 = vmatpush1.bf16.msra.mxu0 0
  %113 = vmatprep.subr.bf16.mxu0 0
  %114 = vmatpush1.bf16.msra.mxu0 0
  %115 = vmatprep.subr.bf16.mxu0 0
  %116 = vmatpush1.bf16.msra.mxu0 0
  %117 = vmatprep.subr.bf16.mxu0 0
  %118 = vmatpush1.bf16.msra.mxu0 0
  %119 = vmatprep.subr.bf16.mxu0 0
  %120 = vmatpush1.bf16.msra.mxu0 0
  %121 = vmatprep.subr.bf16.mxu0 0
  %122 = vmatpush1.bf16.msra.mxu0 0
  %123 = vmatprep.subr.bf16.mxu0 0
  %124 = vmatpush1.bf16.msra.mxu0 0
  %125 = vmatprep.subr.bf16.mxu0 0
  %126 = vmatpush1.bf16.msra.mxu0 0
  %127 = vmatprep.subr.bf16.mxu0 0
  %128 = vmatpush1.bf16.msra.mxu0 0
  %129 = vmatprep.subr.bf16.mxu0 0
  %130 = vmatpush1.bf16.msra.mxu0 0
  %131 = vmatprep.subr.bf16.mxu0 0
  %132 = vmatpush1.bf16.msra.mxu0 0
  %133 = vmatprep.subr.bf16.mxu0 0
  %134 = vmatpush1.bf16.msra.mxu0 0
  %135 = vmatprep.subr.bf16.mxu0 0
  %136 = vmatpush1.bf16.msra.mxu0 0
  %137 = vmatprep.mubr.bf16.mxu0 0
  %138 = vmatmul.mubr.bf16.gmra.mrb[0].mxu0 %v103
  %v139 = vpop.f32.mrb[0].mxu0
  %v140 = vadd.f32 %v87, %v139
  %v141 = vpop.f32.mrb[0].mxu0
  %v142 = vpop.f32.mrb[0].mxu0
  %v143 = vadd.f32 %v87, %v142
  %v144 = vpop.f32.mrb[0].mxu0
  %145 = vdwg.mxu0
  %v146 = vpack.c.bf16 %v143, %v140
  %v148 = vunpack.c.l.b16 %v146
  %v149 = vunpack.c.h.b16 %v146
  %v150 = vpack.c.b16 %v148, %v148
  %v151 = vpack.c.b16 %v149, %v149
  %vm154 = vcmask 781312
  %155 = vst.msk [vmem:[%s5] sm:$0xf] %vm154, %v150
  %156 = vst.msk [vmem:[%s5 + $0x4] sm:$0xf] %vm154, %v151
  // Predicated region
  $region26: #{midi_model_forward.11} parent=0 // pred_check
    _
  $region27: #{midi_model_forward.11} parent=0 // pred_check_branch
    %158 = sbr.rel (0) target = $region29
  $region28: #{midi_model_forward.11} parent=0 // pred_region
    _
  $region29: #{midi_model_forward.11} parent=0 // pred_fallthru
    _
  // Predicated region
  $region30: #{midi_model_forward.11} parent=0 // pred_check
    _
  $region31: #{midi_model_forward.11} parent=0 // pred_check_branch
    %160 = sbr.rel (0) target = $region33
  $region32: #{midi_model_forward.11} parent=0 // pred_region
    _
  $region33: #{midi_model_forward.11} parent=0 // pred_fallthru
    _

// kernel: midi_model_forward.13
$region0: #{midi_model_forward.13}
  #allocation0 [shape = 'u32[]', space=smem, size = 0x4, offset = 0x4, fixed_abs, tag = 'smem constant byte address 0x4 - core index']
  #allocation1 [shape = 'u32[144,128]{1,0:T(1,128)}', space=vmem, size = 0x12000, scoped, tag = 'internal scratch']
  #allocation2 [shape = 'f32[16,32]{1,0:T(8,128)}', space=vmem, size = 0x2000, scoped, tag = 'scratch operand']
  %s0 = inlined_call_operand.vmem [shape: bf16[16,32], index: 0, kind: input, shape index: {}]
  %s1 = inlined_call_operand.vmem [shape: bf16[32,32], index: 1, kind: input, shape index: {}]
  %s2 = inlined_call_operand.vmem [shape: f32[1,32], index: 2, kind: input, shape index: {}]
  %s3 = inlined_call_operand.vmem [shape: bf16[16,32], index: 3, kind: input, shape index: {}]
  %s4 = inlined_call_operand.vmem [shape: bf16[16,32], index: 4, kind: output, shape index: {}]
  %s5 = sld [smem:[#allocation0]]
  $region34: #{midi_model_forward.13} parent=0
    _
  %s7 = ssub.s32 1, %s5
  %s8 = scalar_select 0, %s7, %s5
  // Predicated region
  $region2: #{midi_model_forward.13} parent=0 // pred_check
    _
  $region3: #{midi_model_forward.13} parent=0 // pred_check_branch
    %10 = sbr.rel (0) target = $region5
  $region4: #{midi_model_forward.13} parent=0 // pred_region
    _
  $region5: #{midi_model_forward.13} parent=0 // pred_fallthru
    _
  // Predicated region
  $region6: #{midi_model_forward.13} parent=0 // pred_check
    _
  $region7: #{midi_model_forward.13} parent=0 // pred_check_branch
    %12 = sbr.rel (0) target = $region9
  $region8: #{midi_model_forward.13} parent=0 // pred_region
    _
  $region9: #{midi_model_forward.13} parent=0 // pred_fallthru
    _
  // Predicated region
  $region10: #{midi_model_forward.13} parent=0 // pred_check
    _
  $region11: #{midi_model_forward.13} parent=0 // pred_check_branch
    %14 = sbr.rel (0) target = $region13
  $region12: #{midi_model_forward.13} parent=0 // pred_region
    _
  $region13: #{midi_model_forward.13} parent=0 // pred_fallthru
    _
  // Predicated region
  $region14: #{midi_model_forward.13} parent=0 // pred_check
    _
  $region15: #{midi_model_forward.13} parent=0 // pred_check_branch
    %16 = sbr.rel (0) target = $region17
  $region16: #{midi_model_forward.13} parent=0 // pred_region
    _
  $region17: #{midi_model_forward.13} parent=0 // pred_fallthru
    _
  %p18 = scmp.eq.s32.totalorder 0, 0
  // Predicated region
  $region18: #{midi_model_forward.13} parent=0 // pred_check
    %p19 = pneg %p18
  $region19: #{midi_model_forward.13} parent=0 // pred_check_branch
    %21 = sbr.rel (%p19) target = $region21
  $region20: #{midi_model_forward.13} parent=0 // pred_region
    %vm22 = vcmask 261120
    %23 = vst.msk [vmem:[#allocation2] sm:$0xff] %vm22, 0.0
    %24 = vst.msk [vmem:[#allocation2 + $0x8] sm:$0xff] %vm22, 0.0
  $region21: #{midi_model_forward.13} parent=0 // pred_fallthru
    _
  %v25 = vld [vmem:[#allocation2] sm:$0xff]
  %v26 = vld [vmem:[#allocation2 + $0x8] sm:$0xff]
  %v27 = vld [vmem:[%s0] sm:$0xf]
  %v28 = vld [vmem:[%s0 + $0x4] sm:$0xf]
  %v29 = vld [vmem:[%s1] sm:$0xf]
  %v30 = vld [vmem:[%s1 + $0x4] sm:$0xf]
  %v31 = vld [vmem:[%s1 + $0x8] sm:$0xf]
  %v32 = vld [vmem:[%s1 + $0xc] sm:$0xf]
  %v35 = vunpack.c.l.b16 %v27
  %v36 = vunpack.c.l.b16 %v28
  %v37 = vpack.c.b16 %v36, %v35
  %v42 = vunpack.c.l.b16 %v29
  %v43 = vunpack.c.l.b16 %v30
  %v44 = vunpack.c.l.b16 %v31
  %v45 = vunpack.c.l.b16 %v32
  %v46 = vpack.c.b16 %v43, %v42
  %v47 = vpack.c.b16 %v45, %v44
  %vm50 = vcmask 261120
  %v52 = vsel %vm50, %v37, 0
  %54 = vmatprep.subr.bf16.mxu0 0
  %55 = vmatpush1.bf16.msra.mxu0 %v46
  %56 = vmatprep.subr.bf16.mxu0 0
  %57 = vmatpush1.bf16.msra.mxu0 %v47
  %58 = vmatprep.subr.bf16.mxu0 0
  %59 = vmatpush1.bf16.msra.mxu0 0
  %60 = vmatprep.subr.bf16.mxu0 0
  %61 = vmatpush1.bf16.msra.mxu0 0
  %62 = vmatprep.subr.bf16.mxu0 0
  %63 = vmatpush1.bf16.msra.mxu0 0
  %64 = vmatprep.subr.bf16.mxu0 0
  %65 = vmatpush1.bf16.msra.mxu0 0
  %66 = vmatprep.subr.bf16.mxu0 0
  %67 = vmatpush1.bf16.msra.mxu0 0
  %68 = vmatprep.subr.bf16.mxu0 0
  %69 = vmatpush1.bf16.msra.mxu0 0
  %70 = vmatprep.subr.bf16.mxu0 0
  %71 = vmatpush1.bf16.msra.mxu0 0
  %72 = vmatprep.subr.bf16.mxu0 0
  %73 = vmatpush1.bf16.msra.mxu0 0
  %74 = vmatprep.subr.bf16.mxu0 0
  %75 = vmatpush1.bf16.msra.mxu0 0
  %76 = vmatprep.subr.bf16.mxu0 0
  %77 = vmatpush1.bf16.msra.mxu0 0
  %78 = vmatprep.subr.bf16.mxu0 0
  %79 = vmatpush1.bf16.msra.mxu0 0
  %80 = vmatprep.subr.bf16.mxu0 0
  %81 = vmatpush1.bf16.msra.mxu0 0
  %82 = vmatprep.subr.bf16.mxu0 0
  %83 = vmatpush1.bf16.msra.mxu0 0
  %84 = vmatprep.subr.bf16.mxu0 0
  %85 = vmatpush1.bf16.msra.mxu0 0
  %86 = vmatprep.mubr.bf16.mxu0 0
  %87 = vmatmul.mubr.bf16.gmra.mrb[0].mxu0 %v52
  %v88 = vpop.f32.mrb[0].mxu0
  %v89 = vadd.f32 0.0, %v88
  %v90 = vpop.f32.mrb[0].mxu0
  %v91 = vpop.f32.mrb[0].mxu0
  %v92 = vadd.f32 0.0, %v91
  %v93 = vpop.f32.mrb[0].mxu0
  %94 = vdwg.mxu0
  %v95 = vadd.f32 %v25, %v89
  %v96 = vadd.f32 %v26, %v92
  %97 = vst.msk [vmem:[#allocation2] sm:$0xff] %vm50, %v95
  %98 = vst.msk [vmem:[#allocation2 + $0x8] sm:$0xff] %vm50, %v96
  // Predicated region
  $region22: #{midi_model_forward.13} parent=0 // pred_check
    %p99 = pneg %p18
  $region23: #{midi_model_forward.13} parent=0 // pred_check_branch
    %101 = sbr.rel (%p99) target = $region25
  $region24: #{midi_model_forward.13} parent=0 // pred_region
    %v102 = vld [vmem:[#allocation2] sm:$0xff]
    %v103 = vld [vmem:[#allocation2 + $0x8] sm:$0xff]
    %v104 = vld [vmem:[%s2] sm:$0x1]
    %v106 = vlaneseq
    %v107 = vshrl.u32 %v106, 7
    %v108 = vsub.s32 0, %v107
    %v109 = vrot.slane %v104, %v108
    %v111 = vadd.f32 %v102, %v109
    %v112 = vadd.f32 %v103, %v109
    %v113 = vld [vmem:[%s3] sm:$0xf]
    %v114 = vld [vmem:[%s3 + $0x4] sm:$0xf]
    %v115 = vunpack.c.l.bf16 %v113
    %v116 = vunpack.c.l.bf16 %v114
    %v117 = vadd.f32 %v111, %v115
    %v118 = vadd.f32 %v112, %v116
    %v119 = vpack.c.bf16 %v118, %v117
    %v121 = vunpack.c.l.b16 %v119
    %v122 = vunpack.c.h.b16 %v119
    %v123 = vpack.c.b16 %v121, %v121
    %v124 = vpack.c.b16 %v122, %v122
    %vm127 = vcmask 257024
    %128 = vst.msk [vmem:[%s4] sm:$0xf] %vm127, %v123
    %129 = vst.msk [vmem:[%s4 + $0x4] sm:$0xf] %vm127, %v124
  $region25: #{midi_model_forward.13} parent=0 // pred_fallthru
    _
  // Predicated region
  $region26: #{midi_model_forward.13} parent=0 // pred_check
    _
  $region27: #{midi_model_forward.13} parent=0 // pred_check_branch
    %131 = sbr.rel (0) target = $region29
  $region28: #{midi_model_forward.13} parent=0 // pred_region
    _
  $region29: #{midi_model_forward.13} parent=0 // pred_fallthru
    _
  // Predicated region
  $region30: #{midi_model_forward.13} parent=0 // pred_check
    _
  $region31: #{midi_model_forward.13} parent=0 // pred_check_branch
    %133 = sbr.rel (0) target = $region33
  $region32: #{midi_model_forward.13} parent=0 // pred_region
    _
  $region33: #{midi_model_forward.13} parent=0 // pred_fallthru
    _

// kernel: midi_model_forward.21
$region0: #{midi_model_forward.21}
  #allocation0 [shape = 'u32[]', space=smem, size = 0x4, offset = 0x4, fixed_abs, tag = 'smem constant byte address 0x4 - core index']
  #allocation1 [shape = 'u32[144,128]{1,0:T(1,128)}', space=vmem, size = 0x12000, scoped, tag = 'internal scratch']
  #allocation2 [shape = 'bf16[16,32]{1,0:T(16,128)(2,1)}', space=vmem, size = 0x1000, scoped, tag = 'scratch operand']
  %s0 = inlined_call_operand.vmem [shape: bf16[16,32], index: 0, kind: input, shape index: {}]
  %s1 = inlined_call_operand.vmem [shape: f32[1,32], index: 1, kind: input, shape index: {}]
  %s2 = inlined_call_operand.vmem [shape: f32[1,32], index: 2, kind: input, shape index: {}]
  %s3 = inlined_call_operand.vmem [shape: bf16[64,32], index: 3, kind: input, shape index: {}]
  %s4 = inlined_call_operand.hbm [shape: f32[16,64], index: 4, kind: output, shape index: {}]
  %s5 = sld [smem:[#allocation0]]
  $region30: #{midi_model_forward.21} parent=0
    _
  %s7 = ssub.s32 1, %s5
  %s8 = scalar_select 0, %s7, %s5
  $region1: #{midi_model_forward.21} parent=0
    #allocation3 [shape = 'u8[8192]{0}', space=vmem, size = 0x2000, scoped, tag = 'output window, operand 0, single buffered']
    #allocation4 [shape = 's32[1]{0}', space=sflag, size = 0x4, scoped, tag = 'scoped memory for midi_model_forward.21']
    %9 = vsyncpa [#allocation4], 0
    // Predicated region
    $region2: #{midi_model_forward.21} parent=1 // pred_check
      _
    $region3: #{midi_model_forward.21} parent=1 // pred_check_branch
      %11 = sbr.rel (0) target = $region5
    $region4: #{midi_model_forward.21} parent=1 // pred_region
      _
    $region5: #{midi_model_forward.21} parent=1 // pred_fallthru
      _
    // Predicated region
    $region6: #{midi_model_forward.21} parent=1 // pred_check
      _
    $region7: #{midi_model_forward.21} parent=1 // pred_check_branch
      %13 = sbr.rel (0) target = $region9
    $region8: #{midi_model_forward.21} parent=1 // pred_region
      _
    $region9: #{midi_model_forward.21} parent=1 // pred_fallthru
      _
    // Predicated region
    $region10: #{midi_model_forward.21} parent=1 // pred_check
      _
    $region11: #{midi_model_forward.21} parent=1 // pred_check_branch
      %15 = sbr.rel (0) target = $region13
    $region12: #{midi_model_forward.21} parent=1 // pred_region
      _
    $region13: #{midi_model_forward.21} parent=1 // pred_fallthru
      _
    // Predicated region
    $region14: #{midi_model_forward.21} parent=1 // pred_check
      _
    $region15: #{midi_model_forward.21} parent=1 // pred_check_branch
      %17 = sbr.rel (0) target = $region17
    $region16: #{midi_model_forward.21} parent=1 // pred_region
      _
    $region17: #{midi_model_forward.21} parent=1 // pred_fallthru
      _
    %p19 = scmp.eq.s32.totalorder 0, 0
    // Predicated region
    $region18: #{midi_model_forward.21} parent=1 // pred_check
      %p20 = pneg %p19
    $region19: #{midi_model_forward.21} parent=1 // pred_check_branch
      %22 = sbr.rel (%p20) target = $region21
    $region20: #{midi_model_forward.21} parent=1 // pred_region
      %v23 = vld [vmem:[%s0] sm:$0xf]
      %v24 = vld [vmem:[%s0 + $0x4] sm:$0xf]
      %v25 = vunpack.c.l.bf16 %v23
      %v26 = vunpack.c.l.bf16 %v24
      %vm27 = vcmask 261120
      %v28 = vsel %vm27, %v25, 0.0
      %29 = vadd.xlane.f32.xlu0 %v28
      %v30 = vpop.xlane.xlu0 %29
      %v31 = vsel %vm27, %v26, 0.0
      %32 = vadd.xlane.f32.xlu0 %v31
      %v33 = vpop.xlane.xlu0 %32
      %v34 = vrcp.pop 32.0
      %v35 = vmul.f32 %v30, %v34
      %v36 = vmul.f32 %v33, %v34
      %v37 = vsub.f32 %v25, %v35
      %v38 = vsub.f32 %v26, %v36
      %v39 = vmul.f32 %v37, %v37
      %v40 = vmul.f32 %v38, %v38
      %v41 = vsel %vm27, %v39, 0.0
      %42 = vadd.xlane.f32.xlu0 %v41
      %v43 = vpop.xlane.xlu0 %42
      %v44 = vsel %vm27, %v40, 0.0
      %45 = vadd.xlane.f32.xlu0 %v44
      %v46 = vpop.xlane.xlu0 %45
      %v47 = vmul.f32 %v43, %v34
      %v48 = vmul.f32 %v46, %v34
      %v49 = vadd.f32 %v47, 1e-05
      %v50 = vadd.f32 %v48, 1e-05
      %v51 = vrsqrt.pop %v49
      %v52 = vrsqrt.pop %v50
      %v53 = vmul.f32 %v37, %v51
      %v54 = vmul.f32 %v38, %v52
      %v55 = vld [vmem:[%s1] sm:$0x1]
      %v57 = vlaneseq
      %v58 = vshrl.u32 %v57, 7
      %v59 = vsub.s32 0, %v58
      %v60 = vrot.slane %v55, %v59
      %v62 = vmul.f32 %v53, %v60
      %v63 = vmul.f32 %v54, %v60
      %v64 = vld [vmem:[%s2] sm:$0x1]
      %v66 = vlaneseq
      %v67 = vshrl.u32 %v66, 7
      %v68 = vsub.s32 0, %v67
      %v69 = vrot.slane %v64, %v68
      %v71 = vadd.f32 %v62, %v69
      %v72 = vadd.f32 %v63, %v69
      %v73 = vpack.c.bf16 %v72, %v71
      %74 = vst.msk [vmem:[#allocation2] sm:$0xff] %vm27, %v73
    $region21: #{midi_model_forward.21} parent=1 // pred_fallthru
      _
    %v75 = vld [vmem:[#allocation2] sm:$0xff]
    %v76 = vld [vmem:[%s3] sm:$0xf]
    %v77 = vld [vmem:[%s3 + $0x4] sm:$0xf]
    %v78 = vld [vmem:[%s3 + $0x8] sm:$0xf]
    %v79 = vld [vmem:[%s3 + $0xc] sm:$0xf]
    %v80 = vld [vmem:[%s3 + $0x10] sm:$0xf]
    %v81 = vld [vmem:[%s3 + $0x14] sm:$0xf]
    %v82 = vld [vmem:[%s3 + $0x18] sm:$0xf]
    %v83 = vld [vmem:[%s3 + $0x1c] sm:$0xf]
    %v92 = vunpack.c.l.b16 %v76
    %v93 = vunpack.c.l.b16 %v77
    %v94 = vunpack.c.l.b16 %v78
    %v95 = vunpack.c.l.b16 %v79
    %v96 = vunpack.c.l.b16 %v80
    %v97 = vunpack.c.l.b16 %v81
    %v98 = vunpack.c.l.b16 %v82
    %v99 = vunpack.c.l.b16 %v83
    %v100 = vpack.c.b16 %v93, %v92
    %v101 = vpack.c.b16 %v95, %v94
    %v102 = vpack.c.b16 %v97, %v96
    %v103 = vpack.c.b16 %v99, %v98
    %vm104 = vcmask 261120
    %v106 = vsel %vm104, %v75, 0
    %v109 = vsel %vm104, %v100, 0
    %v112 = vsel %vm104, %v101, 0
    %v115 = vsel %vm104, %v102, 0
    %v118 = vsel %vm104, %v103, 0
    %120 = vmatprep.subr.bf16.mxu0 0
    %121 = vmatpush1.bf16.xpose.msra.mxu0 %v109
    %122 = vmatprep.subr.bf16.mxu0 0
    %123 = vmatpush1.bf16.xpose.msra.mxu0 %v112
    %124 = vmatprep.subr.bf16.mxu0 0
    %125 = vmatpush1.bf16.xpose.msra.mxu0 %v115
    %126 = vmatprep.subr.bf16.mxu0 0
    %127 = vmatpush1.bf16.xpose.msra.mxu0 %v118
    %128 = vmatprep.subr.bf16.mxu0 0
    %129 = vmatpush1.bf16.xpose.msra.mxu0 0
    %130 = vmatprep.subr.bf16.mxu0 0
    %131 = vmatpush1.bf16.xpose.msra.mxu0 0
    %132 = vmatprep.subr.bf16.mxu0 0
    %133 = vmatpush1.bf16.xpose.msra.mxu0 0
    %134 = vmatprep.subr.bf16.mxu0 0
    %135 = vmatpush1.bf16.xpose.msra.mxu0 0
    %136 = vmatprep.subr.bf16.mxu0 0
    %137 = vmatpush1.bf16.xpose.msra.mxu0 0
    %138 = vmatprep.subr.bf16.mxu0 0
    %139 = vmatpush1.bf16.xpose.msra.mxu0 0
    %140 = vmatprep.subr.bf16.mxu0 0
    %141 = vmatpush1.bf16.xpose.msra.mxu0 0
    %142 = vmatprep.subr.bf16.mxu0 0
    %143 = vmatpush1.bf16.xpose.msra.mxu0 0
    %144 = vmatprep.subr.bf16.mxu0 0
    %145 = vmatpush1.bf16.xpose.msra.mxu0 0
    %146 = vmatprep.subr.bf16.mxu0 0
    %147 = vmatpush1.bf16.xpose.msra.mxu0 0
    %148 = vmatprep.subr.bf16.mxu0 0
    %149 = vmatpush1.bf16.xpose.msra.mxu0 0
    %150 = vmatprep.subr.bf16.mxu0 0
    %151 = vmatpush1.bf16.xpose.msra.mxu0 0
    %152 = vmatprep.mubr.bf16.mxu0 0
    %153 = vmatmul.mubr.bf16.gmra.mrb[0].mxu0 %v106
    %v154 = vpop.f32.mrb[0].mxu0
    %v155 = vadd.f32 0.0, %v154
    %v156 = vpop.f32.mrb[0].mxu0
    %v157 = vpop.f32.mrb[0].mxu0
    %v158 = vadd.f32 0.0, %v157
    %v159 = vpop.f32.mrb[0].mxu0
    %160 = vdwg.mxu0
    %vm161 = vcmask 523264
    %162 = vst.msk [vmem:[#allocation3] sm:$0xff] %vm161, %v155
    %163 = vst.msk [vmem:[#allocation3 + $0x8] sm:$0xff] %vm161, %v158
    // Predicated region
    $region22: #{midi_model_forward.21} parent=1 // pred_check
      _
    $region23: #{midi_model_forward.21} parent=1 // pred_check_branch
      %165 = sbr.rel (0) target = $region25
    $region24: #{midi_model_forward.21} parent=1 // pred_region
      %s167 = ssub.s32 256, 256
      %168 = vsyncadd [#allocation4], %s167
      %s169 = sshll.u32 [#allocation3], 4
      %s170 = int_to_ptr.vmem [resolvable:$true] %s169
      %175 = dma.vmem_to_hbm [thread:$0]  %s170, 256, %s4, [#allocation4], 128, 128, 8
    $region25: #{midi_model_forward.21} parent=1 // pred_fallthru
      _
    // Predicated region
    $region26: #{midi_model_forward.21} parent=1 // pred_check
      _
    $region27: #{midi_model_forward.21} parent=1 // pred_check_branch
      %177 = sbr.rel (0) target = $region29
    $region28: #{midi_model_forward.21} parent=1 // pred_region
      %178 = dma.done [#allocation4], 256
    $region29: #{midi_model_forward.21} parent=1 // pred_fallthru
      _
    %179 = vsyncpa [#allocation4], 1

// kernel: midi_model_forward.15
$region0: #{midi_model_forward.15}
  #allocation0 [shape = 'u32[]', space=smem, size = 0x4, offset = 0x4, fixed_abs, tag = 'smem constant byte address 0x4 - core index']
  #allocation1 [shape = 'u32[144,128]{1,0:T(1,128)}', space=vmem, size = 0x12000, scoped, tag = 'internal scratch']
  #allocation2 [shape = 'f32[16,32]{1,0:T(8,128)}', space=vmem, size = 0x2000, scoped, tag = 'scratch operand']
  %s0 = inlined_call_operand.vmem [shape: bf16[16,128], index: 0, kind: input, shape index: {}]
  %s1 = inlined_call_operand.vmem [shape: bf16[128,32], index: 1, kind: input, shape index: {}]
  %s2 = inlined_call_operand.vmem [shape: f32[1,32], index: 2, kind: input, shape index: {}]
  %s3 = inlined_call_operand.vmem [shape: bf16[16,32], index: 3, kind: input, shape index: {}]
  %s4 = inlined_call_operand.vmem [shape: bf16[16,32], index: 4, kind: output, shape index: {}]
  %s5 = sld [smem:[#allocation0]]
  $region34: #{midi_model_forward.15} parent=0
    _
  %s7 = ssub.s32 1, %s5
  %s8 = scalar_select 0, %s7, %s5
  // Predicated region
  $region2: #{midi_model_forward.15} parent=0 // pred_check
    _
  $region3: #{midi_model_forward.15} parent=0 // pred_check_branch
    %10 = sbr.rel (0) target = $region5
  $region4: #{midi_model_forward.15} parent=0 // pred_region
    _
  $region5: #{midi_model_forward.15} parent=0 // pred_fallthru
    _
  // Predicated region
  $region6: #{midi_model_forward.15} parent=0 // pred_check
    _
  $region7: #{midi_model_forward.15} parent=0 // pred_check_branch
    %12 = sbr.rel (0) target = $region9
  $region8: #{midi_model_forward.15} parent=0 // pred_region
    _
  $region9: #{midi_model_forward.15} parent=0 // pred_fallthru
    _
  // Predicated region
  $region10: #{midi_model_forward.15} parent=0 // pred_check
    _
  $region11: #{midi_model_forward.15} parent=0 // pred_check_branch
    %14 = sbr.rel (0) target = $region13
  $region12: #{midi_model_forward.15} parent=0 // pred_region
    _
  $region13: #{midi_model_forward.15} parent=0 // pred_fallthru
    _
  // Predicated region
  $region14: #{midi_model_forward.15} parent=0 // pred_check
    _
  $region15: #{midi_model_forward.15} parent=0 // pred_check_branch
    %16 = sbr.rel (0) target = $region17
  $region16: #{midi_model_forward.15} parent=0 // pred_region
    _
  $region17: #{midi_model_forward.15} parent=0 // pred_fallthru
    _
  %p18 = scmp.eq.s32.totalorder 0, 0
  // Predicated region
  $region18: #{midi_model_forward.15} parent=0 // pred_check
    %p19 = pneg %p18
  $region19: #{midi_model_forward.15} parent=0 // pred_check_branch
    %21 = sbr.rel (%p19) target = $region21
  $region20: #{midi_model_forward.15} parent=0 // pred_region
    %vm22 = vcmask 261120
    %23 = vst.msk [vmem:[#allocation2] sm:$0xff] %vm22, 0.0
    %24 = vst.msk [vmem:[#allocation2 + $0x8] sm:$0xff] %vm22, 0.0
  $region21: #{midi_model_forward.15} parent=0 // pred_fallthru
    _
  %v25 = vld [vmem:[#allocation2] sm:$0xff]
  %v26 = vld [vmem:[#allocation2 + $0x8] sm:$0xff]
  %v27 = vld [vmem:[%s0] sm:$0xf]
  %v28 = vld [vmem:[%s0 + $0x4] sm:$0xf]
  %v29 = vld [vmem:[%s1] sm:$0xf]
  %v30 = vld [vmem:[%s1 + $0x4] sm:$0xf]
  %v31 = vld [vmem:[%s1 + $0x8] sm:$0xf]
  %v32 = vld [vmem:[%s1 + $0xc] sm:$0xf]
  %v33 = vld [vmem:[%s1 + $0x10] sm:$0xf]
  %v34 = vld [vmem:[%s1 + $0x14] sm:$0xf]
  %v35 = vld [vmem:[%s1 + $0x18] sm:$0xf]
  %v36 = vld [vmem:[%s1 + $0x1c] sm:$0xf]
  %v37 = vld [vmem:[%s1 + $0x20] sm:$0xf]
  %v38 = vld [vmem:[%s1 + $0x24] sm:$0xf]
  %v39 = vld [vmem:[%s1 + $0x28] sm:$0xf]
  %v40 = vld [vmem:[%s1 + $0x2c] sm:$0xf]
  %v41 = vld [vmem:[%s1 + $0x30] sm:$0xf]
  %v42 = vld [vmem:[%s1 + $0x34] sm:$0xf]
  %v43 = vld [vmem:[%s1 + $0x38] sm:$0xf]
  %v44 = vld [vmem:[%s1 + $0x3c] sm:$0xf]
  %v47 = vunpack.c.l.b16 %v27
  %v48 = vunpack.c.l.b16 %v28
  %v49 = vpack.c.b16 %v48, %v47
  %v67 = vunpack.c.l.b16 %v29
  %v68 = vunpack.c.l.b16 %v30
  %v69 = vunpack.c.l.b16 %v31
  %v70 = vunpack.c.l.b16 %v32
  %v71 = vunpack.c.l.b16 %v33
  %v72 = vunpack.c.l.b16 %v34
  %v73 = vunpack.c.l.b16 %v35
  %v74 = vunpack.c.l.b16 %v36
  %v75 = vunpack.c.l.b16 %v37
  %v76 = vunpack.c.l.b16 %v38
  %v77 = vunpack.c.l.b16 %v39
  %v78 = vunpack.c.l.b16 %v40
  %v79 = vunpack.c.l.b16 %v41
  %v80 = vunpack.c.l.b16 %v42
  %v81 = vunpack.c.l.b16 %v43
  %v82 = vunpack.c.l.b16 %v44
  %v83 = vpack.c.b16 %v68, %v67
  %v84 = vpack.c.b16 %v70, %v69
  %v85 = vpack.c.b16 %v72, %v71
  %v86 = vpack.c.b16 %v74, %v73
  %v87 = vpack.c.b16 %v76, %v75
  %v88 = vpack.c.b16 %v78, %v77
  %v89 = vpack.c.b16 %v80, %v79
  %v90 = vpack.c.b16 %v82, %v81
  %99 = vmatprep.subr.bf16.mxu0 0
  %100 = vmatpush1.bf16.msra.mxu0 %v83
  %101 = vmatprep.subr.bf16.mxu0 0
  %102 = vmatpush1.bf16.msra.mxu0 %v84
  %103 = vmatprep.subr.bf16.mxu0 0
  %104 = vmatpush1.bf16.msra.mxu0 %v85
  %105 = vmatprep.subr.bf16.mxu0 0
  %106 = vmatpush1.bf16.msra.mxu0 %v86
  %107 = vmatprep.subr.bf16.mxu0 0
  %108 = vmatpush1.bf16.msra.mxu0 %v87
  %109 = vmatprep.subr.bf16.mxu0 0
  %110 = vmatpush1.bf16.msra.mxu0 %v88
  %111 = vmatprep.subr.bf16.mxu0 0
  %112 = vmatpush1.bf16.msra.mxu0 %v89
  %113 = vmatprep.subr.bf16.mxu0 0
  %114 = vmatpush1.bf16.msra.mxu0 %v90
  %115 = vmatprep.subr.bf16.mxu0 0
  %116 = vmatpush1.bf16.msra.mxu0 0
  %117 = vmatprep.subr.bf16.mxu0 0
  %118 = vmatpush1.bf16.msra.mxu0 0
  %119 = vmatprep.subr.bf16.mxu0 0
  %120 = vmatpush1.bf16.msra.mxu0 0
  %121 = vmatprep.subr.bf16.mxu0 0
  %122 = vmatpush1.bf16.msra.mxu0 0
  %123 = vmatprep.subr.bf16.mxu0 0
  %124 = vmatpush1.bf16.msra.mxu0 0
  %125 = vmatprep.subr.bf16.mxu0 0
  %126 = vmatpush1.bf16.msra.mxu0 0
  %127 = vmatprep.subr.bf16.mxu0 0
  %128 = vmatpush1.bf16.msra.mxu0 0
  %129 = vmatprep.subr.bf16.mxu0 0
  %130 = vmatpush1.bf16.msra.mxu0 0
  %131 = vmatprep.mubr.bf16.mxu0 0
  %132 = vmatmul.mubr.bf16.gmra.mrb[0].mxu0 %v49
  %v133 = vpop.f32.mrb[0].mxu0
  %v134 = vadd.f32 0.0, %v133
  %v135 = vpop.f32.mrb[0].mxu0
  %v136 = vpop.f32.mrb[0].mxu0
  %v137 = vadd.f32 0.0, %v136
  %v138 = vpop.f32.mrb[0].mxu0
  %139 = vdwg.mxu0
  %v140 = vadd.f32 %v25, %v134
  %v141 = vadd.f32 %v26, %v137
  %vm142 = vcmask 261120
  %143 = vst.msk [vmem:[#allocation2] sm:$0xff] %vm142, %v140
  %144 = vst.msk [vmem:[#allocation2 + $0x8] sm:$0xff] %vm142, %v141
  // Predicated region
  $region22: #{midi_model_forward.15} parent=0 // pred_check
    %p145 = pneg %p18
  $region23: #{midi_model_forward.15} parent=0 // pred_check_branch
    %147 = sbr.rel (%p145) target = $region25
  $region24: #{midi_model_forward.15} parent=0 // pred_region
    %v148 = vld [vmem:[#allocation2] sm:$0xff]
    %v149 = vld [vmem:[#allocation2 + $0x8] sm:$0xff]
    %v150 = vld [vmem:[%s2] sm:$0x1]
    %v152 = vlaneseq
    %v153 = vshrl.u32 %v152, 7
    %v154 = vsub.s32 0, %v153
    %v155 = vrot.slane %v150, %v154
    %v157 = vadd.f32 %v148, %v155
    %v158 = vadd.f32 %v149, %v155
    %v159 = vld [vmem:[%s3] sm:$0xf]
    %v160 = vld [vmem:[%s3 + $0x4] sm:$0xf]
    %v161 = vunpack.c.l.bf16 %v159
    %v162 = vunpack.c.l.bf16 %v160
    %v163 = vadd.f32 %v157, %v161
    %v164 = vadd.f32 %v158, %v162
    %v165 = vpack.c.bf16 %v164, %v163
    %v167 = vunpack.c.l.b16 %v165
    %v168 = vunpack.c.h.b16 %v165
    %v169 = vpack.c.b16 %v167, %v167
    %v170 = vpack.c.b16 %v168, %v168
    %vm173 = vcmask 257024
    %174 = vst.msk [vmem:[%s4] sm:$0xf] %vm173, %v169
    %175 = vst.msk [vmem:[%s4 + $0x4] sm:$0xf] %vm173, %v170
  $region25: #{midi_model_forward.15} parent=0 // pred_fallthru
    _
  // Predicated region
  $region26: #{midi_model_forward.15} parent=0 // pred_check
    _
  $region27: #{midi_model_forward.15} parent=0 // pred_check_branch
    %177 = sbr.rel (0) target = $region29
  $region28: #{midi_model_forward.15} parent=0 // pred_region
    _
  $region29: #{midi_model_forward.15} parent=0 // pred_fallthru
    _
  // Predicated region
  $region30: #{midi_model_forward.15} parent=0 // pred_check
    _
  $region31: #{midi_model_forward.15} parent=0 // pred_check_branch
    %179 = sbr.rel (0) target = $region33
  $region32: #{midi_model_forward.15} parent=0 // pred_region
    _
  $region33: #{midi_model_forward.15} parent=0 // pred_fallthru
    _

</llo_original>
